<compile_context>
chip_gen: v5e
topology: v5e:2x2
jax: 0.10.0
libtpu: 0.0.40
codegen_flags: <defaults>
</compile_context>

<pallas_src>
import jax
import jax.numpy as jnp
from jax.experimental import pallas as pl
from jax.experimental.pallas import tpu as pltpu


def _silu(x):
    # exp and the approximate reciprocal both run on the EUP, keeping VALU slots free.
    return x * pl.reciprocal(1.0 + jnp.exp(-x), approx=True)


def _make_fused_kernel(num_layers, L, c_in):
    """Fused [num_layers x (ResnetBlock1d + ReLU)] + upsample head for one batch element."""

    def kernel(x_ref, rw_ref, rb_ref, hw_ref, hb_ref, o_ref, frame_ref):
        # ---- in-kernel 'same' padding: frame rows = [0, 0, x_0..x_{L-1}, 0, 0] ----
        frame_ref[...] = jnp.zeros((L + 4, c_in), jnp.float32)
        frame_ref[2:L + 2, :] = x_ref[0].astype(jnp.float32)

        def dot_bf16(a, w):
            # bf16 operands, f32 accumulation on the MXU.
            return jnp.dot(a.astype(jnp.bfloat16), w, preferred_element_type=jnp.float32)

        for layer in range(num_layers):
            w = 6 * layer                           # tap base of conv1; conv2 taps at w+3..w+5
            xp = frame_ref[...]                     # (L+4, C) f32; rows 0,1,L+2,L+3 are zero
            a1 = _silu(xp)                          # silu(0)=0 -> pad rows stay zero
            # conv1 on the extended frame: rows 1..L are real outputs, rows 0 / L+1 are
            # re-zeroed below and act as the zero padding of conv2.
            h1 = (dot_bf16(a1[0:L + 2], rw_ref[w + 0])
                  + dot_bf16(a1[1:L + 3], rw_ref[w + 1])
                  + dot_bf16(a1[2:L + 4], rw_ref[w + 2])
                  + rb_ref[2 * layer].astype(jnp.float32))           # (L+2, C)
            rows = jax.lax.broadcasted_iota(jnp.int32, (L + 2, c_in), 0)
            a2 = jnp.where((rows >= 1) & (rows <= L), _silu(h1), 0.0)
            h2 = (dot_bf16(a2[0:L], rw_ref[w + 3])
                  + dot_bf16(a2[1:L + 1], rw_ref[w + 4])
                  + dot_bf16(a2[2:L + 2], rw_ref[w + 5])
                  + rb_ref[2 * layer + 1].astype(jnp.float32))       # (L, C)
            # residual (to_out = Identity) + ReLU, written back into the padded frame.
            frame_ref[2:L + 2, :] = jnp.maximum(h2 + xp[2:L + 2], 0.0)

        # ---- upsample head: one 3-tap conv with phase-packed (C_in, out_cols) taps ----
        hp = frame_ref[1:L + 3, :]                  # (L+2, C_in); rows 0 and L+1 are zero pads
        y = (dot_bf16(hp[0:L], hw_ref[0])
             + dot_bf16(hp[1:L + 1], hw_ref[1])
             + dot_bf16(hp[2:L + 2], hw_ref[2])
             + hb_ref[...].astype(jnp.float32))                       # (L, out_cols), lane-dense
        o_ref[0] = y.astype(o_ref.dtype)

    return kernel


def prepare_params(params, factor):
    """One-time (hoisted) conversion of PyTorch-layout weights into the kernel layout.

    Resnet convs: PyTorch (C, C, 3) -> 3 taps of (C_in, C_out), stacked, bf16.
    Upsample head packed as a single 3-tap conv with (C_in, out_cols) taps:
      factor == 1 : out_cols = C_out, taps = transposed Conv1d weight.
      factor >= 2 : ConvTranspose1d decomposed into `factor` polyphases (2 taps each, input
                    offsets in {-1, 0, +1}); phase r occupies output lanes
                    [r*C_out, (r+1)*C_out) so the kernel emits all phases lane-packed and the
                    wrapper reshape interleaves them in time.
    """
    blocks = params["blocks"]
    num_layers = len(blocks)
    rw, rb = [], []
    for (w1, b1, w2, b2) in blocks:
        for w, b in ((w1, b1), (w2, b2)):
            rw.append(jnp.transpose(w, (2, 1, 0)))          # (3, C_in, C_out)
            rb.append(b.reshape(1, -1))
    rw = jnp.concatenate(rw, axis=0).astype(jnp.bfloat16)   # (num_layers*6, C, C)
    rb = jnp.stack(rb, axis=0).astype(jnp.float32)          # (num_layers*2, 1, C)

    wu, bu = params["upsample"]
    if factor == 1:
        c_out = wu.shape[0]
        hw = jnp.transpose(wu, (2, 1, 0))                   # (3, C_in, C_out)
        hb = bu.reshape(1, c_out)
    else:
        c_in, c_out, K = wu.shape                           # ConvTranspose1d weight layout
        p = factor // 2 + factor % 2
        left = K - 1 - p
        # forward-conv-equivalent kernel of the transpose conv: W'[k] = wu[:, :, K-1-k]
        wconv = jnp.transpose(jnp.flip(wu, axis=2), (2, 0, 1))   # (K, C_in, C_out)
        hw = jnp.zeros((3, c_in, factor * c_out), wu.dtype)
        for r in range(factor):
            k0 = (left - r) % factor
            d0 = (r + k0 - left) // factor                   # input offset of tap 0: -1 or 0
            for t in range(2):                               # two taps per phase
                s = 1 + d0 + t                               # which of the 3 conv taps (0..2)
                hw = hw.at[s, :, r * c_out:(r + 1) * c_out].set(wconv[k0 + t * factor])
        hb = jnp.tile(bu, factor).reshape(1, factor * c_out)
    return {"rw": rw, "rb": rb, "hw": hw.astype(jnp.bfloat16), "hb": hb.astype(jnp.float32),
            "num_layers": num_layers, "factor": factor, "c_out": c_out}


def upsample_block_1d(x, prepared):
    """Fused Pallas forward of UpsampleBlock1d. x: (B, C_in, L) PyTorch NCL layout."""
    B, C_in, L = x.shape
    factor = prepared["factor"]
    num_layers = prepared["num_layers"]
    c_out = prepared["c_out"]
    rw, rb, hw, hb = prepared["rw"], prepared["rb"], prepared["hw"], prepared["hb"]
    out_cols = hw.shape[-1]                                  # factor * c_out

    xc = jnp.transpose(x, (0, 2, 1))                         # (B, L, C_in): channels on lanes
    y = pl.pallas_call(
        _make_fused_kernel(num_layers, L, C_in),
        out_shape=jax.ShapeDtypeStruct((B, L, out_cols), x.dtype),
        grid=(B,),
        in_specs=[
            pl.BlockSpec((1, L, C_in), lambda b: (b, 0, 0)),
            pl.BlockSpec(rw.shape, lambda b: (0, 0, 0)),     # weights: constant block index
            pl.BlockSpec(rb.shape, lambda b: (0, 0, 0)),     #   -> DMA'd once, VMEM-resident
            pl.BlockSpec(hw.shape, lambda b: (0, 0, 0)),
            pl.BlockSpec(hb.shape, lambda b: (0, 0)),
        ],
        out_specs=pl.BlockSpec((1, L, out_cols), lambda b: (b, 0, 0)),
        scratch_shapes=[pltpu.VMEM((L + 4, C_in), jnp.float32)],
        compiler_params=pltpu.CompilerParams(dimension_semantics=("parallel",)),
    )(xc, rw, rb, hw, hb)
    # (B, L, factor*C_out) -> (B, factor*L, C_out): phase r of row m lands at t = m*factor + r.
    y = y.reshape(B, factor * L, c_out)
    return jnp.transpose(y, (0, 2, 1))                       # (B, C_out, factor*L)


# ----------------------- pure-JAX reference (for verification) -----------------------

def _ref_conv1d(x, w, b, padding):
    y = jax.lax.conv_general_dilated(
        x, w, window_strides=(1,), padding=[(padding, padding)],
        dimension_numbers=("NCH", "OIH", "NCH"),
        precision=jax.lax.Precision.HIGHEST)
    return y + b[None, :, None]


def _ref_conv_transpose1d(x, w, b, stride, padding, output_padding):
    K = w.shape[2]
    w_conv = jnp.flip(jnp.transpose(w, (1, 0, 2)), axis=2)        # (C_out, C_in, K)
    y = jax.lax.conv_general_dilated(
        x, w_conv, window_strides=(1,),
        padding=[(K - 1 - padding, K - 1 - padding + output_padding)],
        lhs_dilation=(stride,),
        dimension_numbers=("NCH", "OIH", "NCH"),
        precision=jax.lax.Precision.HIGHEST)
    return y + b[None, :, None]


def _ref_upsample_block_1d(x, params, *, factor):
    def silu(v):
        return v * jax.nn.sigmoid(v)
    for (w1, b1, w2, b2) in params["blocks"]:
        h = _ref_conv1d(silu(x), w1, b1, 1)
        h = _ref_conv1d(silu(h), w2, b2, 1)
        x = jax.nn.relu(h + x)
    wu, bu = params["upsample"]
    if factor == 1:
        return _ref_conv1d(x, wu, bu, 1)
    return _ref_conv_transpose1d(x, wu, bu, factor, factor // 2 + factor % 2, factor % 2)


def _init_params(key, c_in, c_out, num_layers, factor):
    def u(k, shape, fan):
        lim = 1.0 / (fan ** 0.5)
        return jax.random.uniform(k, shape, jnp.float32, -lim, lim)

    blocks = []
    for _ in range(num_layers):
        key, k1, k2, k3, k4 = jax.random.split(key, 5)
        blocks.append((u(k1, (c_in, c_in, 3), c_in * 3), u(k2, (c_in,), c_in * 3),
                       u(k3, (c_in, c_in, 3), c_in * 3), u(k4, (c_in,), c_in * 3)))
    key, ku, kb = jax.random.split(key, 3)
    if factor == 1:
        wu = u(ku, (c_out, c_in, 3), c_in * 3)           # Conv1d weight (C_out, C_in, K)
        bu = u(kb, (c_out,), c_in * 3)
    else:
        K = 2 * factor
        wu = u(ku, (c_in, c_out, K), c_in * K)           # ConvTranspose1d weight (C_in, C_out, K)
        bu = u(kb, (c_out,), c_in * K)
    return {"blocks": blocks, "upsample": (wu, bu)}


if __name__ == "__main__":
    key = jax.random.PRNGKey(0)
    B, C_IN, C_OUT, L = 2, 32, 16, 16
    NUM_LAYERS, FACTOR = 2, 2            # num_groups unused (use_norm=False in the module)

    key, kx, kp = jax.random.split(key, 3)
    x = jax.random.normal(kx, (B, C_IN, L), dtype=jnp.float32)

    # factor >= 2 path (ConvTranspose1d upsample head, polyphase)
    params = _init_params(kp, C_IN, C_OUT, NUM_LAYERS, FACTOR)
    prepared = prepare_params(params, FACTOR)            # hoisted weight prep (bf16, packed)
    y = jax.block_until_ready(upsample_block_1d(x, prepared))
    assert y.shape == (B, C_OUT, FACTOR * L), y.shape
    y_ref = _ref_upsample_block_1d(x, params, factor=FACTOR)
    err = float(jnp.max(jnp.abs(y - y_ref)))
    assert jnp.allclose(y, y_ref, atol=2e-2, rtol=2e-2), err   # bf16-operand MXU vs f32 ref

    # factor == 1 path (plain Conv1d k=3 pad=1 upsample head)
    key, kp1 = jax.random.split(key)
    params1 = _init_params(kp1, C_IN, C_OUT, NUM_LAYERS, 1)
    prepared1 = prepare_params(params1, 1)
    y1 = jax.block_until_ready(upsample_block_1d(x, prepared1))
    assert y1.shape == (B, C_OUT, L), y1.shape
    y1_ref = _ref_upsample_block_1d(x, params1, factor=1)
    err1 = float(jnp.max(jnp.abs(y1 - y1_ref)))
    assert jnp.allclose(y1, y1_ref, atol=2e-2, rtol=2e-2), err1

    print("KERNEL_OK")
</pallas_src>

<mosaic_0001>
module attributes {stable_mosaic.version = 11 : i64} {
  func.func @kernel(%arg0: i32, %arg1: memref<1x16x32xf32, #tpu.memory_space<vmem>>, %arg2: memref<12x32x32xbf16, #tpu.memory_space<vmem>>, %arg3: memref<4x1x32xf32, #tpu.memory_space<vmem>>, %arg4: memref<3x32x32xbf16, #tpu.memory_space<vmem>>, %arg5: memref<1x32xf32, #tpu.memory_space<vmem>>, %arg6: memref<1x16x32xf32, #tpu.memory_space<vmem>>, %arg7: memref<20x32xf32, #tpu.memory_space<vmem>>) attributes {dimension_semantics = [#tpu.dimension_semantics<parallel>], iteration_bounds = array<i64: 2>, scalar_prefetch = 0 : i64, scratch_operands = 1 : i64, tpu.core_type = #tpu.core_type<tc>, window_params = [{transform_indices = @transform_0, window_bounds = array<i64: 1, 16, 32>}, {pipeline_mode = #tpu.pipeline_mode<synchronous>, transform_indices = @transform_1, window_bounds = array<i64: 12, 32, 32>}, {pipeline_mode = #tpu.pipeline_mode<synchronous>, transform_indices = @transform_2, window_bounds = array<i64: 4, 1, 32>}, {pipeline_mode = #tpu.pipeline_mode<synchronous>, transform_indices = @transform_3, window_bounds = array<i64: 3, 32, 32>}, {pipeline_mode = #tpu.pipeline_mode<synchronous>, transform_indices = @transform_4, window_bounds = array<i64: 1, 32>}, {transform_indices = @transform_5, window_bounds = array<i64: 1, 16, 32>}]} {
    %cst = arith.constant 0.000000e+00 : f32
    %0 = vector.broadcast %cst : f32 to vector<20x32xf32>
    %c0 = arith.constant 0 : index
    %c0_0 = arith.constant 0 : index
    %1 = vector.load %arg7[%c0, %c0_0] : memref<20x32xf32, #tpu.memory_space<vmem>>, vector<20x32xf32>
    tpu.vector_store %arg7[%c0, %c0_0], %0 {strides = array<i32>} : memref<20x32xf32, #tpu.memory_space<vmem>>, vector<20x32xf32>,
    %c0_1 = arith.constant 0 : index
    %c0_2 = arith.constant 0 : index
    %c0_3 = arith.constant 0 : index
    %2 = vector.load %arg1[%c0_1, %c0_2, %c0_3] : memref<1x16x32xf32, #tpu.memory_space<vmem>>, vector<1x16x32xf32>
    %3 = vector.shape_cast %2 : vector<1x16x32xf32> to vector<16x32xf32>
    %c2 = arith.constant 2 : index
    %c0_4 = arith.constant 0 : index
    %4 = vector.load %arg7[%c2, %c0_4] : memref<20x32xf32, #tpu.memory_space<vmem>>, vector<16x32xf32>
    tpu.vector_store %arg7[%c2, %c0_4], %3 {strides = array<i32>} : memref<20x32xf32, #tpu.memory_space<vmem>>, vector<16x32xf32>,
    %c0_5 = arith.constant 0 : index
    %c0_6 = arith.constant 0 : index
    %5 = vector.load %arg7[%c0_5, %c0_6] : memref<20x32xf32, #tpu.memory_space<vmem>>, vector<20x32xf32>
    %cst_7 = arith.constant 0.000000e+00 : f32
    %6 = vector.broadcast %cst_7 : f32 to vector<20x32xf32>
    %7 = arith.subf %6, %5 : vector<20x32xf32>
    %8 = math.exp %7 : vector<20x32xf32>
    %cst_8 = arith.constant 1.000000e+00 : f32
    %9 = vector.broadcast %cst_8 : f32 to vector<20x32xf32>
    %10 = arith.addf %9, %8 : vector<20x32xf32>
    %11 = tpu.reciprocal %10 {approx = true} : vector<20x32xf32> -> vector<20x32xf32>
    %12 = arith.mulf %5, %11 : vector<20x32xf32>
    %13 = vector.extract_strided_slice %12 {offsets = [0, 0], sizes = [18, 32], strides = [1, 1]} : vector<20x32xf32> to vector<18x32xf32>
    %c0_9 = arith.constant 0 : index
    %c0_10 = arith.constant 0 : index
    %c0_11 = arith.constant 0 : index
    %14 = vector.load %arg2[%c0_9, %c0_10, %c0_11] : memref<12x32x32xbf16, #tpu.memory_space<vmem>>, vector<1x32x32xbf16>
    %15 = vector.shape_cast %14 : vector<1x32x32xbf16> to vector<32x32xbf16>
    %16 = arith.truncf %13 : vector<18x32xf32> to vector<18x32xbf16>
    %cst_12 = arith.constant dense<0.000000e+00> : vector<18x32xf32>
    %17 = tpu.matmul %16, %15, %cst_12 {dimension_numbers = #tpu.dot_dimension_numbers<[1], [0], [0], [1], [0, 0, 1, 1], [], []>} : vector<18x32xbf16>, vector<32x32xbf16>, vector<18x32xf32> -> vector<18x32xf32>
    %18 = vector.extract_strided_slice %12 {offsets = [1, 0], sizes = [18, 32], strides = [1, 1]} : vector<20x32xf32> to vector<18x32xf32>
    %c1 = arith.constant 1 : index
    %c0_13 = arith.constant 0 : index
    %c0_14 = arith.constant 0 : index
    %19 = vector.load %arg2[%c1, %c0_13, %c0_14] : memref<12x32x32xbf16, #tpu.memory_space<vmem>>, vector<1x32x32xbf16>
    %20 = vector.shape_cast %19 : vector<1x32x32xbf16> to vector<32x32xbf16>
    %21 = arith.truncf %18 : vector<18x32xf32> to vector<18x32xbf16>
    %cst_15 = arith.constant dense<0.000000e+00> : vector<18x32xf32>
    %22 = tpu.matmul %21, %20, %cst_15 {dimension_numbers = #tpu.dot_dimension_numbers<[1], [0], [0], [1], [0, 0, 1, 1], [], []>} : vector<18x32xbf16>, vector<32x32xbf16>, vector<18x32xf32> -> vector<18x32xf32>
    %23 = arith.addf %17, %22 : vector<18x32xf32>
    %24 = vector.extract_strided_slice %12 {offsets = [2, 0], sizes = [18, 32], strides = [1, 1]} : vector<20x32xf32> to vector<18x32xf32>
    %c2_16 = arith.constant 2 : index
    %c0_17 = arith.constant 0 : index
    %c0_18 = arith.constant 0 : index
    %25 = vector.load %arg2[%c2_16, %c0_17, %c0_18] : memref<12x32x32xbf16, #tpu.memory_space<vmem>>, vector<1x32x32xbf16>
    %26 = vector.shape_cast %25 : vector<1x32x32xbf16> to vector<32x32xbf16>
    %27 = arith.truncf %24 : vector<18x32xf32> to vector<18x32xbf16>
    %cst_19 = arith.constant dense<0.000000e+00> : vector<18x32xf32>
    %28 = tpu.matmul %27, %26, %cst_19 {dimension_numbers = #tpu.dot_dimension_numbers<[1], [0], [0], [1], [0, 0, 1, 1], [], []>} : vector<18x32xbf16>, vector<32x32xbf16>, vector<18x32xf32> -> vector<18x32xf32>
    %29 = arith.addf %23, %28 : vector<18x32xf32>
    %c0_20 = arith.constant 0 : index
    %c0_21 = arith.constant 0 : index
    %c0_22 = arith.constant 0 : index
    %30 = vector.load %arg3[%c0_20, %c0_21, %c0_22] : memref<4x1x32xf32, #tpu.memory_space<vmem>>, vector<1x1x32xf32>
    %31 = vector.shape_cast %30 : vector<1x1x32xf32> to vector<1x32xf32>
    %32 = vector.broadcast %31 : vector<1x32xf32> to vector<18x32xf32>
    %33 = arith.addf %29, %32 : vector<18x32xf32>
    %34 = tpu.iota {dimensions = array<i32: 0>} : vector<18x32xi32>
    %c1_i32 = arith.constant 1 : i32
    %35 = vector.broadcast %c1_i32 : i32 to vector<18x32xi32>
    %36 = arith.cmpi sge, %34, %35 : vector<18x32xi32>
    %c16_i32 = arith.constant 16 : i32
    %37 = vector.broadcast %c16_i32 : i32 to vector<18x32xi32>
    %38 = arith.cmpi sle, %34, %37 : vector<18x32xi32>
    %39 = arith.andi %36, %38 : vector<18x32xi1>
    %cst_23 = arith.constant 0.000000e+00 : f32
    %40 = vector.broadcast %cst_23 : f32 to vector<18x32xf32>
    %41 = arith.subf %40, %33 : vector<18x32xf32>
    %42 = math.exp %41 : vector<18x32xf32>
    %cst_24 = arith.constant 1.000000e+00 : f32
    %43 = vector.broadcast %cst_24 : f32 to vector<18x32xf32>
    %44 = arith.addf %43, %42 : vector<18x32xf32>
    %45 = tpu.reciprocal %44 {approx = true} : vector<18x32xf32> -> vector<18x32xf32>
    %46 = arith.mulf %33, %45 : vector<18x32xf32>
    %cst_25 = arith.constant 0.000000e+00 : f32
    %47 = vector.broadcast %cst_25 : f32 to vector<18x32xf32>
    %48 = arith.select %39, %46, %47 : vector<18x32xi1>, vector<18x32xf32>
    %49 = vector.extract_strided_slice %48 {offsets = [0, 0], sizes = [16, 32], strides = [1, 1]} : vector<18x32xf32> to vector<16x32xf32>
    %c3 = arith.constant 3 : index
    %c0_26 = arith.constant 0 : index
    %c0_27 = arith.constant 0 : index
    %50 = vector.load %arg2[%c3, %c0_26, %c0_27] : memref<12x32x32xbf16, #tpu.memory_space<vmem>>, vector<1x32x32xbf16>
    %51 = vector.shape_cast %50 : vector<1x32x32xbf16> to vector<32x32xbf16>
    %52 = arith.truncf %49 : vector<16x32xf32> to vector<16x32xbf16>
    %cst_28 = arith.constant dense<0.000000e+00> : vector<16x32xf32>
    %53 = tpu.matmul %52, %51, %cst_28 {dimension_numbers = #tpu.dot_dimension_numbers<[1], [0], [0], [1], [0, 0, 1, 1], [], []>} : vector<16x32xbf16>, vector<32x32xbf16>, vector<16x32xf32> -> vector<16x32xf32>
    %54 = vector.extract_strided_slice %48 {offsets = [1, 0], sizes = [16, 32], strides = [1, 1]} : vector<18x32xf32> to vector<16x32xf32>
    %c4 = arith.constant 4 : index
    %c0_29 = arith.constant 0 : index
    %c0_30 = arith.constant 0 : index
    %55 = vector.load %arg2[%c4, %c0_29, %c0_30] : memref<12x32x32xbf16, #tpu.memory_space<vmem>>, vector<1x32x32xbf16>
    %56 = vector.shape_cast %55 : vector<1x32x32xbf16> to vector<32x32xbf16>
    %57 = arith.truncf %54 : vector<16x32xf32> to vector<16x32xbf16>
    %cst_31 = arith.constant dense<0.000000e+00> : vector<16x32xf32>
    %58 = tpu.matmul %57, %56, %cst_31 {dimension_numbers = #tpu.dot_dimension_numbers<[1], [0], [0], [1], [0, 0, 1, 1], [], []>} : vector<16x32xbf16>, vector<32x32xbf16>, vector<16x32xf32> -> vector<16x32xf32>
    %59 = arith.addf %53, %58 : vector<16x32xf32>
    %60 = vector.extract_strided_slice %48 {offsets = [2, 0], sizes = [16, 32], strides = [1, 1]} : vector<18x32xf32> to vector<16x32xf32>
    %c5 = arith.constant 5 : index
    %c0_32 = arith.constant 0 : index
    %c0_33 = arith.constant 0 : index
    %61 = vector.load %arg2[%c5, %c0_32, %c0_33] : memref<12x32x32xbf16, #tpu.memory_space<vmem>>, vector<1x32x32xbf16>
    %62 = vector.shape_cast %61 : vector<1x32x32xbf16> to vector<32x32xbf16>
    %63 = arith.truncf %60 : vector<16x32xf32> to vector<16x32xbf16>
    %cst_34 = arith.constant dense<0.000000e+00> : vector<16x32xf32>
    %64 = tpu.matmul %63, %62, %cst_34 {dimension_numbers = #tpu.dot_dimension_numbers<[1], [0], [0], [1], [0, 0, 1, 1], [], []>} : vector<16x32xbf16>, vector<32x32xbf16>, vector<16x32xf32> -> vector<16x32xf32>
    %65 = arith.addf %59, %64 : vector<16x32xf32>
    %c1_35 = arith.constant 1 : index
    %c0_36 = arith.constant 0 : index
    %c0_37 = arith.constant 0 : index
    %66 = vector.load %arg3[%c1_35, %c0_36, %c0_37] : memref<4x1x32xf32, #tpu.memory_space<vmem>>, vector<1x1x32xf32>
    %67 = vector.shape_cast %66 : vector<1x1x32xf32> to vector<1x32xf32>
    %68 = vector.broadcast %67 : vector<1x32xf32> to vector<16x32xf32>
    %69 = arith.addf %65, %68 : vector<16x32xf32>
    %70 = vector.extract_strided_slice %5 {offsets = [2, 0], sizes = [16, 32], strides = [1, 1]} : vector<20x32xf32> to vector<16x32xf32>
    %71 = arith.addf %69, %70 : vector<16x32xf32>
    %cst_38 = arith.constant 0.000000e+00 : f32
    %72 = vector.broadcast %cst_38 : f32 to vector<16x32xf32>
    %73 = arith.maximumf %71, %72 : vector<16x32xf32>
    %c2_39 = arith.constant 2 : index
    %c0_40 = arith.constant 0 : index
    %74 = vector.load %arg7[%c2_39, %c0_40] : memref<20x32xf32, #tpu.memory_space<vmem>>, vector<16x32xf32>
    tpu.vector_store %arg7[%c2_39, %c0_40], %73 {strides = array<i32>} : memref<20x32xf32, #tpu.memory_space<vmem>>, vector<16x32xf32>,
    %c0_41 = arith.constant 0 : index
    %c0_42 = arith.constant 0 : index
    %75 = vector.load %arg7[%c0_41, %c0_42] : memref<20x32xf32, #tpu.memory_space<vmem>>, vector<20x32xf32>
    %cst_43 = arith.constant 0.000000e+00 : f32
    %76 = vector.broadcast %cst_43 : f32 to vector<20x32xf32>
    %77 = arith.subf %76, %75 : vector<20x32xf32>
    %78 = math.exp %77 : vector<20x32xf32>
    %cst_44 = arith.constant 1.000000e+00 : f32
    %79 = vector.broadcast %cst_44 : f32 to vector<20x32xf32>
    %80 = arith.addf %79, %78 : vector<20x32xf32>
    %81 = tpu.reciprocal %80 {approx = true} : vector<20x32xf32> -> vector<20x32xf32>
    %82 = arith.mulf %75, %81 : vector<20x32xf32>
    %83 = vector.extract_strided_slice %82 {offsets = [0, 0], sizes = [18, 32], strides = [1, 1]} : vector<20x32xf32> to vector<18x32xf32>
    %c6 = arith.constant 6 : index
    %c0_45 = arith.constant 0 : index
    %c0_46 = arith.constant 0 : index
    %84 = vector.load %arg2[%c6, %c0_45, %c0_46] : memref<12x32x32xbf16, #tpu.memory_space<vmem>>, vector<1x32x32xbf16>
    %85 = vector.shape_cast %84 : vector<1x32x32xbf16> to vector<32x32xbf16>
    %86 = arith.truncf %83 : vector<18x32xf32> to vector<18x32xbf16>
    %cst_47 = arith.constant dense<0.000000e+00> : vector<18x32xf32>
    %87 = tpu.matmul %86, %85, %cst_47 {dimension_numbers = #tpu.dot_dimension_numbers<[1], [0], [0], [1], [0, 0, 1, 1], [], []>} : vector<18x32xbf16>, vector<32x32xbf16>, vector<18x32xf32> -> vector<18x32xf32>
    %88 = vector.extract_strided_slice %82 {offsets = [1, 0], sizes = [18, 32], strides = [1, 1]} : vector<20x32xf32> to vector<18x32xf32>
    %c7 = arith.constant 7 : index
    %c0_48 = arith.constant 0 : index
    %c0_49 = arith.constant 0 : index
    %89 = vector.load %arg2[%c7, %c0_48, %c0_49] : memref<12x32x32xbf16, #tpu.memory_space<vmem>>, vector<1x32x32xbf16>
    %90 = vector.shape_cast %89 : vector<1x32x32xbf16> to vector<32x32xbf16>
    %91 = arith.truncf %88 : vector<18x32xf32> to vector<18x32xbf16>
    %cst_50 = arith.constant dense<0.000000e+00> : vector<18x32xf32>
    %92 = tpu.matmul %91, %90, %cst_50 {dimension_numbers = #tpu.dot_dimension_numbers<[1], [0], [0], [1], [0, 0, 1, 1], [], []>} : vector<18x32xbf16>, vector<32x32xbf16>, vector<18x32xf32> -> vector<18x32xf32>
    %93 = arith.addf %87, %92 : vector<18x32xf32>
    %94 = vector.extract_strided_slice %82 {offsets = [2, 0], sizes = [18, 32], strides = [1, 1]} : vector<20x32xf32> to vector<18x32xf32>
    %c8 = arith.constant 8 : index
    %c0_51 = arith.constant 0 : index
    %c0_52 = arith.constant 0 : index
    %95 = vector.load %arg2[%c8, %c0_51, %c0_52] : memref<12x32x32xbf16, #tpu.memory_space<vmem>>, vector<1x32x32xbf16>
    %96 = vector.shape_cast %95 : vector<1x32x32xbf16> to vector<32x32xbf16>
    %97 = arith.truncf %94 : vector<18x32xf32> to vector<18x32xbf16>
    %cst_53 = arith.constant dense<0.000000e+00> : vector<18x32xf32>
    %98 = tpu.matmul %97, %96, %cst_53 {dimension_numbers = #tpu.dot_dimension_numbers<[1], [0], [0], [1], [0, 0, 1, 1], [], []>} : vector<18x32xbf16>, vector<32x32xbf16>, vector<18x32xf32> -> vector<18x32xf32>
    %99 = arith.addf %93, %98 : vector<18x32xf32>
    %c2_54 = arith.constant 2 : index
    %c0_55 = arith.constant 0 : index
    %c0_56 = arith.constant 0 : index
    %100 = vector.load %arg3[%c2_54, %c0_55, %c0_56] : memref<4x1x32xf32, #tpu.memory_space<vmem>>, vector<1x1x32xf32>
    %101 = vector.shape_cast %100 : vector<1x1x32xf32> to vector<1x32xf32>
    %102 = vector.broadcast %101 : vector<1x32xf32> to vector<18x32xf32>
    %103 = arith.addf %99, %102 : vector<18x32xf32>
    %104 = tpu.iota {dimensions = array<i32: 0>} : vector<18x32xi32>
    %c1_i32_57 = arith.constant 1 : i32
    %105 = vector.broadcast %c1_i32_57 : i32 to vector<18x32xi32>
    %106 = arith.cmpi sge, %104, %105 : vector<18x32xi32>
    %c16_i32_58 = arith.constant 16 : i32
    %107 = vector.broadcast %c16_i32_58 : i32 to vector<18x32xi32>
    %108 = arith.cmpi sle, %104, %107 : vector<18x32xi32>
    %109 = arith.andi %106, %108 : vector<18x32xi1>
    %cst_59 = arith.constant 0.000000e+00 : f32
    %110 = vector.broadcast %cst_59 : f32 to vector<18x32xf32>
    %111 = arith.subf %110, %103 : vector<18x32xf32>
    %112 = math.exp %111 : vector<18x32xf32>
    %cst_60 = arith.constant 1.000000e+00 : f32
    %113 = vector.broadcast %cst_60 : f32 to vector<18x32xf32>
    %114 = arith.addf %113, %112 : vector<18x32xf32>
    %115 = tpu.reciprocal %114 {approx = true} : vector<18x32xf32> -> vector<18x32xf32>
    %116 = arith.mulf %103, %115 : vector<18x32xf32>
    %cst_61 = arith.constant 0.000000e+00 : f32
    %117 = vector.broadcast %cst_61 : f32 to vector<18x32xf32>
    %118 = arith.select %109, %116, %117 : vector<18x32xi1>, vector<18x32xf32>
    %119 = vector.extract_strided_slice %118 {offsets = [0, 0], sizes = [16, 32], strides = [1, 1]} : vector<18x32xf32> to vector<16x32xf32>
    %c9 = arith.constant 9 : index
    %c0_62 = arith.constant 0 : index
    %c0_63 = arith.constant 0 : index
    %120 = vector.load %arg2[%c9, %c0_62, %c0_63] : memref<12x32x32xbf16, #tpu.memory_space<vmem>>, vector<1x32x32xbf16>
    %121 = vector.shape_cast %120 : vector<1x32x32xbf16> to vector<32x32xbf16>
    %122 = arith.truncf %119 : vector<16x32xf32> to vector<16x32xbf16>
    %cst_64 = arith.constant dense<0.000000e+00> : vector<16x32xf32>
    %123 = tpu.matmul %122, %121, %cst_64 {dimension_numbers = #tpu.dot_dimension_numbers<[1], [0], [0], [1], [0, 0, 1, 1], [], []>} : vector<16x32xbf16>, vector<32x32xbf16>, vector<16x32xf32> -> vector<16x32xf32>
    %124 = vector.extract_strided_slice %118 {offsets = [1, 0], sizes = [16, 32], strides = [1, 1]} : vector<18x32xf32> to vector<16x32xf32>
    %c10 = arith.constant 10 : index
    %c0_65 = arith.constant 0 : index
    %c0_66 = arith.constant 0 : index
    %125 = vector.load %arg2[%c10, %c0_65, %c0_66] : memref<12x32x32xbf16, #tpu.memory_space<vmem>>, vector<1x32x32xbf16>
    %126 = vector.shape_cast %125 : vector<1x32x32xbf16> to vector<32x32xbf16>
    %127 = arith.truncf %124 : vector<16x32xf32> to vector<16x32xbf16>
    %cst_67 = arith.constant dense<0.000000e+00> : vector<16x32xf32>
    %128 = tpu.matmul %127, %126, %cst_67 {dimension_numbers = #tpu.dot_dimension_numbers<[1], [0], [0], [1], [0, 0, 1, 1], [], []>} : vector<16x32xbf16>, vector<32x32xbf16>, vector<16x32xf32> -> vector<16x32xf32>
    %129 = arith.addf %123, %128 : vector<16x32xf32>
    %130 = vector.extract_strided_slice %118 {offsets = [2, 0], sizes = [16, 32], strides = [1, 1]} : vector<18x32xf32> to vector<16x32xf32>
    %c11 = arith.constant 11 : index
    %c0_68 = arith.constant 0 : index
    %c0_69 = arith.constant 0 : index
    %131 = vector.load %arg2[%c11, %c0_68, %c0_69] : memref<12x32x32xbf16, #tpu.memory_space<vmem>>, vector<1x32x32xbf16>
    %132 = vector.shape_cast %131 : vector<1x32x32xbf16> to vector<32x32xbf16>
    %133 = arith.truncf %130 : vector<16x32xf32> to vector<16x32xbf16>
    %cst_70 = arith.constant dense<0.000000e+00> : vector<16x32xf32>
    %134 = tpu.matmul %133, %132, %cst_70 {dimension_numbers = #tpu.dot_dimension_numbers<[1], [0], [0], [1], [0, 0, 1, 1], [], []>} : vector<16x32xbf16>, vector<32x32xbf16>, vector<16x32xf32> -> vector<16x32xf32>
    %135 = arith.addf %129, %134 : vector<16x32xf32>
    %c3_71 = arith.constant 3 : index
    %c0_72 = arith.constant 0 : index
    %c0_73 = arith.constant 0 : index
    %136 = vector.load %arg3[%c3_71, %c0_72, %c0_73] : memref<4x1x32xf32, #tpu.memory_space<vmem>>, vector<1x1x32xf32>
    %137 = vector.shape_cast %136 : vector<1x1x32xf32> to vector<1x32xf32>
    %138 = vector.broadcast %137 : vector<1x32xf32> to vector<16x32xf32>
    %139 = arith.addf %135, %138 : vector<16x32xf32>
    %140 = vector.extract_strided_slice %75 {offsets = [2, 0], sizes = [16, 32], strides = [1, 1]} : vector<20x32xf32> to vector<16x32xf32>
    %141 = arith.addf %139, %140 : vector<16x32xf32>
    %cst_74 = arith.constant 0.000000e+00 : f32
    %142 = vector.broadcast %cst_74 : f32 to vector<16x32xf32>
    %143 = arith.maximumf %141, %142 : vector<16x32xf32>
    %c2_75 = arith.constant 2 : index
    %c0_76 = arith.constant 0 : index
    %144 = vector.load %arg7[%c2_75, %c0_76] : memref<20x32xf32, #tpu.memory_space<vmem>>, vector<16x32xf32>
    tpu.vector_store %arg7[%c2_75, %c0_76], %143 {strides = array<i32>} : memref<20x32xf32, #tpu.memory_space<vmem>>, vector<16x32xf32>,
    %c1_77 = arith.constant 1 : index
    %c0_78 = arith.constant 0 : index
    %145 = vector.load %arg7[%c1_77, %c0_78] : memref<20x32xf32, #tpu.memory_space<vmem>>, vector<18x32xf32>
    %146 = vector.extract_strided_slice %145 {offsets = [0, 0], sizes = [16, 32], strides = [1, 1]} : vector<18x32xf32> to vector<16x32xf32>
    %c0_79 = arith.constant 0 : index
    %c0_80 = arith.constant 0 : index
    %c0_81 = arith.constant 0 : index
    %147 = vector.load %arg4[%c0_79, %c0_80, %c0_81] : memref<3x32x32xbf16, #tpu.memory_space<vmem>>, vector<1x32x32xbf16>
    %148 = vector.shape_cast %147 : vector<1x32x32xbf16> to vector<32x32xbf16>
    %149 = arith.truncf %146 : vector<16x32xf32> to vector<16x32xbf16>
    %cst_82 = arith.constant dense<0.000000e+00> : vector<16x32xf32>
    %150 = tpu.matmul %149, %148, %cst_82 {dimension_numbers = #tpu.dot_dimension_numbers<[1], [0], [0], [1], [0, 0, 1, 1], [], []>} : vector<16x32xbf16>, vector<32x32xbf16>, vector<16x32xf32> -> vector<16x32xf32>
    %151 = vector.extract_strided_slice %145 {offsets = [1, 0], sizes = [16, 32], strides = [1, 1]} : vector<18x32xf32> to vector<16x32xf32>
    %c1_83 = arith.constant 1 : index
    %c0_84 = arith.constant 0 : index
    %c0_85 = arith.constant 0 : index
    %152 = vector.load %arg4[%c1_83, %c0_84, %c0_85] : memref<3x32x32xbf16, #tpu.memory_space<vmem>>, vector<1x32x32xbf16>
    %153 = vector.shape_cast %152 : vector<1x32x32xbf16> to vector<32x32xbf16>
    %154 = arith.truncf %151 : vector<16x32xf32> to vector<16x32xbf16>
    %cst_86 = arith.constant dense<0.000000e+00> : vector<16x32xf32>
    %155 = tpu.matmul %154, %153, %cst_86 {dimension_numbers = #tpu.dot_dimension_numbers<[1], [0], [0], [1], [0, 0, 1, 1], [], []>} : vector<16x32xbf16>, vector<32x32xbf16>, vector<16x32xf32> -> vector<16x32xf32>
    %156 = arith.addf %150, %155 : vector<16x32xf32>
    %157 = vector.extract_strided_slice %145 {offsets = [2, 0], sizes = [16, 32], strides = [1, 1]} : vector<18x32xf32> to vector<16x32xf32>
    %c2_87 = arith.constant 2 : index
    %c0_88 = arith.constant 0 : index
    %c0_89 = arith.constant 0 : index
    %158 = vector.load %arg4[%c2_87, %c0_88, %c0_89] : memref<3x32x32xbf16, #tpu.memory_space<vmem>>, vector<1x32x32xbf16>
    %159 = vector.shape_cast %158 : vector<1x32x32xbf16> to vector<32x32xbf16>
    %160 = arith.truncf %157 : vector<16x32xf32> to vector<16x32xbf16>
    %cst_90 = arith.constant dense<0.000000e+00> : vector<16x32xf32>
    %161 = tpu.matmul %160, %159, %cst_90 {dimension_numbers = #tpu.dot_dimension_numbers<[1], [0], [0], [1], [0, 0, 1, 1], [], []>} : vector<16x32xbf16>, vector<32x32xbf16>, vector<16x32xf32> -> vector<16x32xf32>
    %162 = arith.addf %156, %161 : vector<16x32xf32>
    %c0_91 = arith.constant 0 : index
    %c0_92 = arith.constant 0 : index
    %163 = vector.load %arg5[%c0_91, %c0_92] : memref<1x32xf32, #tpu.memory_space<vmem>>, vector<1x32xf32>
    %164 = vector.broadcast %163 : vector<1x32xf32> to vector<16x32xf32>
    %165 = arith.addf %162, %164 : vector<16x32xf32>
    %c0_93 = arith.constant 0 : index
    %c0_94 = arith.constant 0 : index
    %c0_95 = arith.constant 0 : index
    %166 = vector.load %arg6[%c0_93, %c0_94, %c0_95] : memref<1x16x32xf32, #tpu.memory_space<vmem>>, vector<1x16x32xf32>
    %167 = vector.shape_cast %166 : vector<1x16x32xf32> to vector<16x32xf32>
    %168 = vector.shape_cast %165 : vector<16x32xf32> to vector<1x16x32xf32>
    tpu.vector_store %arg6[%c0_93, %c0_94, %c0_95], %168 {strides = array<i32>} : memref<1x16x32xf32, #tpu.memory_space<vmem>>, vector<1x16x32xf32>,
    return
  }
  func.func @transform_0(%arg0: i32) -> (i32, i32, i32) {
    %c0_i32 = arith.constant 0 : i32
    %c0_i32_0 = arith.constant 0 : i32
    %c0_i32_1 = arith.constant 0 : i32
    return %arg0, %c0_i32, %c0_i32_0 : i32, i32, i32
  }
  func.func @transform_1(%arg0: i32) -> (i32, i32, i32) {
    %c0_i32 = arith.constant 0 : i32
    %c0_i32_0 = arith.constant 0 : i32
    %c0_i32_1 = arith.constant 0 : i32
    %c0_i32_2 = arith.constant 0 : i32
    return %c0_i32, %c0_i32_0, %c0_i32_1 : i32, i32, i32
  }
  func.func @transform_2(%arg0: i32) -> (i32, i32, i32) {
    %c0_i32 = arith.constant 0 : i32
    %c0_i32_0 = arith.constant 0 : i32
    %c0_i32_1 = arith.constant 0 : i32
    %c0_i32_2 = arith.constant 0 : i32
    return %c0_i32, %c0_i32_0, %c0_i32_1 : i32, i32, i32
  }
  func.func @transform_3(%arg0: i32) -> (i32, i32, i32) {
    %c0_i32 = arith.constant 0 : i32
    %c0_i32_0 = arith.constant 0 : i32
    %c0_i32_1 = arith.constant 0 : i32
    %c0_i32_2 = arith.constant 0 : i32
    return %c0_i32, %c0_i32_0, %c0_i32_1 : i32, i32, i32
  }
  func.func @transform_4(%arg0: i32) -> (i32, i32) {
    %c0_i32 = arith.constant 0 : i32
    %c0_i32_0 = arith.constant 0 : i32
    %c0_i32_1 = arith.constant 0 : i32
    return %c0_i32, %c0_i32_0 : i32, i32
  }
  func.func @transform_5(%arg0: i32) -> (i32, i32, i32) {
    %c0_i32 = arith.constant 0 : i32
    %c0_i32_0 = arith.constant 0 : i32
    %c0_i32_1 = arith.constant 0 : i32
    return %arg0, %c0_i32, %c0_i32_0 : i32, i32, i32
  }
}

</mosaic_0001>

<llo_original>
// kernel: tpu_custom_call.1
$region0: #{tpu_custom_call.1}
  #allocation0 [shape = 'u32[]', space=smem, size = 0x4, offset = 0x4, fixed_abs, tag = 'smem constant byte address 0x4 - core index']
  #allocation1 [shape = 'u32[72,128]{1,0:T(1,128)}', space=vmem, size = 0x9000, scoped, tag = 'internal scratch']
  #allocation2 [shape = 'f32[20,32]{1,0:T(8,128)}', space=vmem, size = 0x3000, scoped, tag = 'scratch operand']
  %s0 = inlined_call_operand.hbm [shape: f32[2,16,32], index: 0, kind: input, shape index: {}]
  %s1 = inlined_call_operand.hbm [shape: bf16[12,32,32], index: 1, kind: input, shape index: {}]
  %s2 = inlined_call_operand.hbm [shape: f32[4,1,32], index: 2, kind: input, shape index: {}]
  %s3 = inlined_call_operand.hbm [shape: bf16[3,32,32], index: 3, kind: input, shape index: {}]
  %s4 = inlined_call_operand.vmem [shape: f32[1,32], index: 4, kind: input, shape index: {}]
  %s5 = inlined_call_operand.hbm [shape: f32[2,16,32], index: 5, kind: output, shape index: {}]
  %s6 = sld [smem:[#allocation0]]
  $region69: #{tpu_custom_call.1} parent=0
    _
  %s8 = ssub.s32 1, %s6
  %s9 = scalar_select 0, %s8, %s6
  $region1: #{tpu_custom_call.1} parent=0
    #allocation3 [shape = 'u8[16384]{0}', space=vmem, size = 0x4000, scoped, tag = 'input window, operand 0']
    #allocation4 [shape = 's32[2]{0}', space=sflag, size = 0x8, scoped, tag = 'scoped memory for tpu_custom_call.1']
    #allocation5 [shape = 's32[2]{0}', space=sflag, size = 0x8, scoped, tag = 'scoped memory for tpu_custom_call.1']
    #allocation6 [shape = 'u8[98304]{0}', space=vmem, size = 0x18000, scoped, tag = 'input window, operand 1, single buffered']
    #allocation7 [shape = 's32[1]{0}', space=sflag, size = 0x4, scoped, tag = 'scoped memory for tpu_custom_call.1']
    #allocation8 [shape = 'u8[2048]{0}', space=vmem, size = 0x800, scoped, tag = 'input window, operand 2, single buffered']
    #allocation9 [shape = 'u8[24576]{0}', space=vmem, size = 0x6000, scoped, tag = 'input window, operand 3, single buffered']
    #allocation10 [shape = 's32[1]{0}', space=sflag, size = 0x4, scoped, tag = 'scoped memory for tpu_custom_call.1']
    #allocation11 [shape = 'u8[16384]{0}', space=vmem, size = 0x4000, scoped, tag = 'output window, operand 0']
    %10 = vsyncpa [#allocation4], 0
    %s11 = scalar_lea.sflag [#allocation4], 1
    %12 = vsyncpa %s11, 0
    %13 = vsyncpa [#allocation7], 0
    %14 = vsyncpa [#allocation10], 0
    %15 = vsyncpa [#allocation5], 0
    %s16 = scalar_lea.sflag [#allocation5], 1
    %17 = vsyncpa %s16, 0
    loop: start=0, step=1, limit=4
    $region2: #{tpu_custom_call.1} parent=1 // loop_pre_header
      _
    $region3: #{tpu_custom_call.1} parent=1 // loop_header
      %s19 = sphi 0, %s23
      %p20 = scmp.ge.s32.totalorder %s19, 4
      %s29 = sphi 0, %s31
      %s32 = sphi 0, %s29
      %s33 = sphi 0, %s32
      %s49 = sphi 0, %s33
      %s53 = sphi 0, %s53
      %s55 = sphi 0, %s53
      %s56 = sphi 0, %s55
      %s70 = sphi 0, %s56
      %s74 = sphi 0, %s74
      %s76 = sphi 0, %s74
      %s77 = sphi 0, %s76
      %s91 = sphi 0, %s77
      %s95 = sphi 0, %s95
      %s97 = sphi 0, %s95
      %s98 = sphi 0, %s97
      %s112 = sphi 0, %s98
      %s116 = sphi 0, %s116
      %s118 = sphi 0, %s116
      %s119 = sphi 0, %s118
      %s133 = sphi 0, %s119
      %s139 = sphi 0, %s141
      %s142 = sphi 0, %s139
      %s143 = sphi 0, %s142
      %s159 = sphi 0, %s143
    $region4: #{tpu_custom_call.1} parent=1 // loop_header_branch
      %22 = sbr.rel (%p20) target = $region8
    $region5: #{tpu_custom_call.1} parent=1 // loop_body
      %s24 = ssub.s32 %s19, 1
      %s25 = ssub.s32 %s19, 2
      %s26 = sadd.s32 %s19, 1
      %s27 = ssub.s32 %s19, %s26
      %p28 = scmp.eq.s32.totalorder %s27, 0
      %s30 = sadd.s32 %s29, 1
      %s31 = scalar_select %p28, %s29, %s30
      %p34 = pneg %p28
      %p35 = scmp.eq.s32.totalorder %s19, 1
      %p36 = por %p34, %p35
      %p37 = scmp.ne.s32.totalorder %s29, %s32
      %p38 = scmp.eq.s32.totalorder %s19, 0
      %p39 = por %p37, %p38
      %p40 = scmp.ne.s32.totalorder %s29, %s32
      %p41 = scmp.eq.s32.totalorder %s24, 1
      %p42 = por %p40, %p41
      %p43 = scmp.ne.s32.totalorder %s32, %s33
      %p44 = scmp.eq.s32.totalorder %s24, 0
      %p45 = por %p43, %p44
      %p46 = scmp.ne.s32.totalorder %s32, %s33
      %p47 = scmp.eq.s32.totalorder %s25, 1
      %p48 = por %p46, %p47
      %p50 = scmp.ne.s32.totalorder %s33, %s49
      %p51 = scmp.eq.s32.totalorder %s25, 0
      %p52 = por %p50, %p51
      %s54 = sadd.s32 %s53, 1
      %p57 = scmp.eq.s32.totalorder %s19, 1
      %p58 = scmp.ne.s32.totalorder %s53, %s55
      %p59 = scmp.eq.s32.totalorder %s19, 0
      %p60 = por %p58, %p59
      %p61 = scmp.ne.s32.totalorder %s53, %s55
      %p62 = scmp.eq.s32.totalorder %s24, 1
      %p63 = por %p61, %p62
      %p64 = scmp.ne.s32.totalorder %s55, %s56
      %p65 = scmp.eq.s32.totalorder %s24, 0
      %p66 = por %p64, %p65
      %p67 = scmp.ne.s32.totalorder %s55, %s56
      %p68 = scmp.eq.s32.totalorder %s25, 1
      %p69 = por %p67, %p68
      %p71 = scmp.ne.s32.totalorder %s56, %s70
      %p72 = scmp.eq.s32.totalorder %s25, 0
      %p73 = por %p71, %p72
      %s75 = sadd.s32 %s74, 1
      %p78 = scmp.eq.s32.totalorder %s19, 1
      %p79 = scmp.ne.s32.totalorder %s74, %s76
      %p80 = scmp.eq.s32.totalorder %s19, 0
      %p81 = por %p79, %p80
      %p82 = scmp.ne.s32.totalorder %s74, %s76
      %p83 = scmp.eq.s32.totalorder %s24, 1
      %p84 = por %p82, %p83
      %p85 = scmp.ne.s32.totalorder %s76, %s77
      %p86 = scmp.eq.s32.totalorder %s24, 0
      %p87 = por %p85, %p86
      %p88 = scmp.ne.s32.totalorder %s76, %s77
      %p89 = scmp.eq.s32.totalorder %s25, 1
      %p90 = por %p88, %p89
      %p92 = scmp.ne.s32.totalorder %s77, %s91
      %p93 = scmp.eq.s32.totalorder %s25, 0
      %p94 = por %p92, %p93
      %s96 = sadd.s32 %s95, 1
      %p99 = scmp.eq.s32.totalorder %s19, 1
      %p100 = scmp.ne.s32.totalorder %s95, %s97
      %p101 = scmp.eq.s32.totalorder %s19, 0
      %p102 = por %p100, %p101
      %p103 = scmp.ne.s32.totalorder %s95, %s97
      %p104 = scmp.eq.s32.totalorder %s24, 1
      %p105 = por %p103, %p104
      %p106 = scmp.ne.s32.totalorder %s97, %s98
      %p107 = scmp.eq.s32.totalorder %s24, 0
      %p108 = por %p106, %p107
      %p109 = scmp.ne.s32.totalorder %s97, %s98
      %p110 = scmp.eq.s32.totalorder %s25, 1
      %p111 = por %p109, %p110
      %p113 = scmp.ne.s32.totalorder %s98, %s112
      %p114 = scmp.eq.s32.totalorder %s25, 0
      %p115 = por %p113, %p114
      %s117 = sadd.s32 %s116, 1
      %p120 = scmp.eq.s32.totalorder %s19, 1
      %p121 = scmp.ne.s32.totalorder %s116, %s118
      %p122 = scmp.eq.s32.totalorder %s19, 0
      %p123 = por %p121, %p122
      %p124 = scmp.ne.s32.totalorder %s116, %s118
      %p125 = scmp.eq.s32.totalorder %s24, 1
      %p126 = por %p124, %p125
      %p127 = scmp.ne.s32.totalorder %s118, %s119
      %p128 = scmp.eq.s32.totalorder %s24, 0
      %p129 = por %p127, %p128
      %p130 = scmp.ne.s32.totalorder %s118, %s119
      %p131 = scmp.eq.s32.totalorder %s25, 1
      %p132 = por %p130, %p131
      %p134 = scmp.ne.s32.totalorder %s119, %s133
      %p135 = scmp.eq.s32.totalorder %s25, 0
      %p136 = por %p134, %p135
      %s137 = ssub.s32 %s19, %s26
      %p138 = scmp.eq.s32.totalorder %s137, 0
      %s140 = sadd.s32 %s139, 1
      %s141 = scalar_select %p138, %s139, %s140
      %p144 = pneg %p138
      %p145 = scmp.eq.s32.totalorder %s19, 1
      %p146 = por %p144, %p145
      %p147 = scmp.ne.s32.totalorder %s139, %s142
      %p148 = scmp.eq.s32.totalorder %s19, 0
      %p149 = por %p147, %p148
      %p150 = scmp.ne.s32.totalorder %s139, %s142
      %p151 = scmp.eq.s32.totalorder %s24, 1
      %p152 = por %p150, %p151
      %p153 = scmp.ne.s32.totalorder %s142, %s143
      %p154 = scmp.eq.s32.totalorder %s24, 0
      %p155 = por %p153, %p154
      %p156 = scmp.ne.s32.totalorder %s142, %s143
      %p157 = scmp.eq.s32.totalorder %s25, 1
      %p158 = por %p156, %p157
      %p160 = scmp.ne.s32.totalorder %s143, %s159
      %p161 = scmp.eq.s32.totalorder %s25, 0
      %p162 = por %p160, %p161
      %p163 = scmp.le.s32.totalorder 1, %s19
      %p164 = scmp.lt.s32.totalorder %s19, 3
      %p165 = pnand %p163, %p164
      %p166 = pneg %p165
      // Predicated region
      $region9: #{tpu_custom_call.1} parent=5 // pred_check
        _
      $region10: #{tpu_custom_call.1} parent=5 // pred_check_branch
        %168 = sbr.rel (%p165) target = $region12
      $region11: #{tpu_custom_call.1} parent=5 // pred_region
        %s169 = ssub.s32 %s19, 1
        // Predicated region
        $region13: #{tpu_custom_call.1} parent=11 // pred_check
          %p170 = pneg %p66
        $region14: #{tpu_custom_call.1} parent=11 // pred_check_branch
          %172 = sbr.rel (%p170) target = $region16
        $region15: #{tpu_custom_call.1} parent=11 // pred_region
          %174 = vsyncadd [#allocation7], 0
          %s175 = sshll.u32 %s1, 4
          %s176 = int_to_ptr.hbm [resolvable:$true] %s175
          %s177 = sshll.u32 [#allocation6], 4
          %s178 = int_to_ptr.vmem [resolvable:$true] %s177
          %183 = dma.hbm_to_vmem [thread:$0]  %s176, 3072, %s178, [#allocation7], 64, 64, 4
        $region16: #{tpu_custom_call.1} parent=11 // pred_fallthru
          _
        // Predicated region
        $region17: #{tpu_custom_call.1} parent=11 // pred_check
          %p184 = pneg %p87
        $region18: #{tpu_custom_call.1} parent=11 // pred_check_branch
          %186 = sbr.rel (%p184) target = $region20
        $region19: #{tpu_custom_call.1} parent=11 // pred_region
          %188 = vsyncadd [#allocation7], 0
          %s189 = sshll.u32 %s2, 4
          %s190 = int_to_ptr.hbm [resolvable:$true] %s189
          %s191 = sshll.u32 [#allocation8], 4
          %s192 = int_to_ptr.vmem [resolvable:$true] %s191
          %197 = dma.hbm_to_vmem [thread:$0]  %s190, 64, %s192, [#allocation7], 16, 16, 1
        $region20: #{tpu_custom_call.1} parent=11 // pred_fallthru
          _
        // Predicated region
        $region21: #{tpu_custom_call.1} parent=11 // pred_check
          %p198 = pneg %p108
        $region22: #{tpu_custom_call.1} parent=11 // pred_check_branch
          %200 = sbr.rel (%p198) target = $region24
        $region23: #{tpu_custom_call.1} parent=11 // pred_region
          %202 = vsyncadd [#allocation10], 0
          %s203 = sshll.u32 %s3, 4
          %s204 = int_to_ptr.hbm [resolvable:$true] %s203
          %s205 = sshll.u32 [#allocation9], 4
          %s206 = int_to_ptr.vmem [resolvable:$true] %s205
          %211 = dma.hbm_to_vmem [thread:$0]  %s204, 768, %s206, [#allocation10], 64, 64, 4
        $region24: #{tpu_custom_call.1} parent=11 // pred_fallthru
          _
        // Predicated region
        $region25: #{tpu_custom_call.1} parent=11 // pred_check
          %p212 = pneg %p129
        $region26: #{tpu_custom_call.1} parent=11 // pred_check_branch
          %214 = sbr.rel (%p212) target = $region28
        $region27: #{tpu_custom_call.1} parent=11 // pred_region
          _
        $region28: #{tpu_custom_call.1} parent=11 // pred_fallthru
          _
      $region12: #{tpu_custom_call.1} parent=5 // pred_fallthru
        _
      %p215 = scmp.lt.s32.totalorder %s19, 2
      // Predicated region
      $region29: #{tpu_custom_call.1} parent=5 // pred_check
        %p216 = pneg %p215
      $region30: #{tpu_custom_call.1} parent=5 // pred_check_branch
        %218 = sbr.rel (%p216) target = $region32
      $region31: #{tpu_custom_call.1} parent=5 // pred_region
        // Predicated region
        $region33: #{tpu_custom_call.1} parent=31 // pred_check
          %p219 = pneg %p39
        $region34: #{tpu_custom_call.1} parent=31 // pred_check_branch
          %221 = sbr.rel (%p219) target = $region36
        $region35: #{tpu_custom_call.1} parent=31 // pred_region
          %s222 = sand.u32 %s29, 1
          %s223 = scalar_lea.sflag [#allocation4], %s222
          %s224 = sand.u32 %s29, 1
          %s225 = smul.addr %s224, 16
          %s226 = scalar_lea.vmem [#allocation3], %s225
          %228 = vsyncadd %s223, 0
          %s229 = smul.addr %s19, 2
          %s230 = smul.addr %s229, 8
          %s231 = scalar_lea.hbm %s0, %s230
          %s232 = sshll.u32 %s231, 4
          %s233 = int_to_ptr.hbm [resolvable:$true] %s232
          %s234 = sshll.u32 %s226, 4
          %s235 = int_to_ptr.vmem [resolvable:$true] %s234
          %240 = dma.hbm_to_vmem [thread:$0]  %s233, 256, %s235, %s223, 128, 128, 8
        $region36: #{tpu_custom_call.1} parent=31 // pred_fallthru
          _
      $region32: #{tpu_custom_call.1} parent=5 // pred_fallthru
        _
      %p241 = scmp.le.s32.totalorder 1, %s19
      %p242 = scmp.lt.s32.totalorder %s19, 3
      %p243 = pnand %p241, %p242
      %p244 = pneg %p243
      // Predicated region
      $region37: #{tpu_custom_call.1} parent=5 // pred_check
        _
      $region38: #{tpu_custom_call.1} parent=5 // pred_check_branch
        %246 = sbr.rel (%p243) target = $region40
      $region39: #{tpu_custom_call.1} parent=5 // pred_region
        %s247 = ssub.s32 %s19, 1
        %s248 = sand.u32 %s32, 1
        %s249 = scalar_lea.sflag [#allocation4], %s248
        %s250 = sand.u32 %s32, 1
        %s251 = smul.addr %s250, 16
        %s252 = scalar_lea.vmem [#allocation3], %s251
        // Predicated region
        $region41: #{tpu_custom_call.1} parent=39 // pred_check
          %p253 = pneg %p45
        $region42: #{tpu_custom_call.1} parent=39 // pred_check_branch
          %255 = sbr.rel (%p253) target = $region44
        $region43: #{tpu_custom_call.1} parent=39 // pred_region
          %257 = dma.done %s249, 256
        $region44: #{tpu_custom_call.1} parent=39 // pred_fallthru
          _
        // Predicated region
        $region45: #{tpu_custom_call.1} parent=39 // pred_check
          %p258 = pneg %p66
        $region46: #{tpu_custom_call.1} parent=39 // pred_check_branch
          %260 = sbr.rel (%p258) target = $region48
        $region47: #{tpu_custom_call.1} parent=39 // pred_region
          %262 = dma.done [#allocation7], 3072
        $region48: #{tpu_custom_call.1} parent=39 // pred_fallthru
          _
        // Predicated region
        $region49: #{tpu_custom_call.1} parent=39 // pred_check
          %p263 = pneg %p87
        $region50: #{tpu_custom_call.1} parent=39 // pred_check_branch
          %265 = sbr.rel (%p263) target = $region52
        $region51: #{tpu_custom_call.1} parent=39 // pred_region
          %267 = dma.done [#allocation7], 64
        $region52: #{tpu_custom_call.1} parent=39 // pred_fallthru
          _
        // Predicated region
        $region53: #{tpu_custom_call.1} parent=39 // pred_check
          %p268 = pneg %p108
        $region54: #{tpu_custom_call.1} parent=39 // pred_check_branch
          %270 = sbr.rel (%p268) target = $region56
        $region55: #{tpu_custom_call.1} parent=39 // pred_region
          %272 = dma.done [#allocation10], 768
        $region56: #{tpu_custom_call.1} parent=39 // pred_fallthru
          _
        %s273 = sand.u32 %s32, 1
        %s274 = scalar_lea.sflag [#allocation4], %s273
        %s275 = sand.u32 %s32, 1
        %s276 = smul.addr %s275, 16
        %s277 = scalar_lea.vmem [#allocation3], %s276
        %p278 = pneg %p45
        %p279 = pneg %p42
        %p280 = pneg %p66
        %p281 = pneg %p63
        %p282 = pneg %p87
        %p283 = pneg %p84
        %p284 = pneg %p108
        %p285 = pneg %p105
        %p286 = pneg %p129
        %p287 = pneg %p126
        %p288 = pneg %p155
        %p289 = pneg %p152
        %s290 = sand.u32 %s142, 1
        %s291 = scalar_lea.sflag [#allocation5], %s290
        %s292 = sand.u32 %s142, 1
        %s293 = smul.addr %s292, 16
        %s294 = scalar_lea.vmem [#allocation11], %s293
        %vm296 = vcmask 261120
        %297 = vst.msk [vmem:[#allocation2] sm:$0xff] %vm296, 0.0
        %298 = vst.msk [vmem:[#allocation2 + $0x8] sm:$0xff] %vm296, 0.0
        %vm299 = vcmask 257024
        %300 = vst.msk [vmem:[#allocation2 + $0x10] sm:$0xf] %vm299, 0.0
        %v301 = vld [vmem:[%s252] sm:$0xff]
        %v302 = vld [vmem:[%s252 + $0x8] sm:$0xff]
        %303 = vst.msk [vmem:[#allocation2 + $0x2] sm:$0xff] %vm296, %v301
        %304 = vst.msk [vmem:[#allocation2 + $0xa] sm:$0xff] %vm296, %v302
        %v305 = vld [vmem:[#allocation2] sm:$0xff]
        %v306 = vld [vmem:[#allocation2 + $0x8] sm:$0xff]
        %v307 = vld [vmem:[#allocation2 + $0x10] sm:$0xf]
        %v308 = vsub.f32 0.0, %v305
        %v309 = vsub.f32 0.0, %v306
        %v310 = vsub.f32 0.0, %v307
        %v311 = vmul.f32 %v308, 1.442695
        %v312 = vpow.pop %v311
        %v313 = vmul.f32 %v309, 1.442695
        %v314 = vpow.pop %v313
        %v315 = vmul.f32 %v310, 1.442695
        %v316 = vpow.pop %v315
        %v317 = vadd.f32 %v312, 1.0
        %v318 = vadd.f32 %v314, 1.0
        %v319 = vadd.f32 %v316, 1.0
        %v320 = vrcp.pop %v317
        %v321 = vrcp.pop %v318
        %v322 = vrcp.pop %v319
        %v323 = vmul.f32 %v305, %v320
        %v324 = vmul.f32 %v306, %v321
        %v325 = vmul.f32 %v307, %v322
        %v326 = vld [vmem:[#allocation6] sm:$0xf]
        %v327 = vld [vmem:[#allocation6 + $0x4] sm:$0xf]
        %v328 = vld [vmem:[#allocation6 + $0x8] sm:$0xf]
        %v329 = vld [vmem:[#allocation6 + $0xc] sm:$0xf]
        %v330 = vpack.c.bf16 %v324, %v323
        %v331 = vpack.c.bf16 %v325, %v325
        %s332 = scalar_lea.vmem [#allocation6], 16
        %v333 = vld [vmem:[%s332] sm:$0xf]
        %v334 = vld [vmem:[%s332 + $0x4] sm:$0xf]
        %v335 = vld [vmem:[%s332 + $0x8] sm:$0xf]
        %v336 = vld [vmem:[%s332 + $0xc] sm:$0xf]
        %vm337 = vsmask.f32 7424
        %v339 = vshrl.u32 %v330, 16
        %v341 = vshll.u32 %v330, 16
        %v343 = vrot.slane %v341, 1
        %v344 = vor.u32 %v339, %v343
        %v346 = vshll.u32 %v331, 16
        %v348 = vrot.slane %v346, 1
        %v349 = vsel %vm337, %v344, %v348
        %v350 = vshrl.u32 %v331, 16
        %v352 = vor.u32 %v350, %v348
        %v357 = vunpack.c.l.b16 %v333
        %v358 = vunpack.c.l.b16 %v334
        %v359 = vunpack.c.l.b16 %v335
        %v360 = vunpack.c.l.b16 %v336
        %v361 = vpack.c.b16 %v358, %v357
        %v362 = vpack.c.b16 %v360, %v359
        %v366 = vsel %vm296, %v349, 0
        %v369 = vsel %vm296, %v352, 0
        %371 = vmatpush.bf16.msra.mxu0 0
        %372 = vmatpush.bf16.msra.mxu0 0
        %373 = vmatpush.bf16.msra.mxu0 0
        %374 = vmatpush.bf16.msra.mxu0 0
        %375 = vmatpush.bf16.msra.mxu0 0
        %376 = vmatpush.bf16.msra.mxu0 0
        %377 = vmatpush.bf16.msra.mxu0 %v362
        %378 = vmatpush.bf16.msra.mxu0 %v361
        %379 = vmatmul.bf16.gmra.mxu0 %v366
        %v380 = vpop.f32.mrf.mxu0
        %v381 = vadd.f32 0.0, %v380
        %v382 = vpop.f32.mrf.mxu0
        %v383 = vadd.f32 0.0, %v382
        %384 = vmatmul.bf16.gmra.mxu0 %v369
        %v385 = vpop.f32.mrf.mxu0
        %v386 = vadd.f32 0.0, %v385
        %v387 = vpop.f32.mrf.mxu0
        %388 = vdwg.mxu0
        %v393 = vunpack.c.l.b16 %v326
        %v394 = vunpack.c.l.b16 %v327
        %v395 = vunpack.c.l.b16 %v328
        %v396 = vunpack.c.l.b16 %v329
        %v397 = vpack.c.b16 %v394, %v393
        %v398 = vpack.c.b16 %v396, %v395
        %v401 = vsel %vm296, %v330, 0
        %v403 = vsel %vm296, %v331, 0
        %405 = vmatpush.bf16.msra.mxu0 0
        %406 = vmatpush.bf16.msra.mxu0 0
        %407 = vmatpush.bf16.msra.mxu0 0
        %408 = vmatpush.bf16.msra.mxu0 0
        %409 = vmatpush.bf16.msra.mxu0 0
        %410 = vmatpush.bf16.msra.mxu0 0
        %411 = vmatpush.bf16.msra.mxu0 %v398
        %412 = vmatpush.bf16.msra.mxu0 %v397
        %413 = vmatmul.bf16.gmra.mxu0 %v401
        %v414 = vpop.f32.mrf.mxu0
        %v415 = vadd.f32 %v381, %v414
        %v416 = vpop.f32.mrf.mxu0
        %v417 = vadd.f32 %v383, %v416
        %418 = vmatmul.bf16.gmra.mxu0 %v403
        %v419 = vpop.f32.mrf.mxu0
        %v420 = vadd.f32 %v386, %v419
        %v421 = vpop.f32.mrf.mxu0
        %422 = vdwg.mxu0
        %s423 = scalar_lea.vmem [#allocation6], 32
        %v424 = vld [vmem:[%s423] sm:$0xf]
        %v425 = vld [vmem:[%s423 + $0x4] sm:$0xf]
        %v426 = vld [vmem:[%s423 + $0x8] sm:$0xf]
        %v427 = vld [vmem:[%s423 + $0xc] sm:$0xf]
        %vm430 = vcmask 1046528
        %v431 = vrot.slane %v330, 1
        %v432 = vrot.slane %v331, 1
        %v433 = vsel %vm430, %v431, %v432
        %v438 = vunpack.c.l.b16 %v424
        %v439 = vunpack.c.l.b16 %v425
        %v440 = vunpack.c.l.b16 %v426
        %v441 = vunpack.c.l.b16 %v427
        %v442 = vpack.c.b16 %v439, %v438
        %v443 = vpack.c.b16 %v441, %v440
        %v447 = vsel %vm296, %v433, 0
        %v450 = vsel %vm296, %v432, 0
        %452 = vmatpush.bf16.msra.mxu0 0
        %453 = vmatpush.bf16.msra.mxu0 0
        %454 = vmatpush.bf16.msra.mxu0 0
        %455 = vmatpush.bf16.msra.mxu0 0
        %456 = vmatpush.bf16.msra.mxu0 0
        %457 = vmatpush.bf16.msra.mxu0 0
        %458 = vmatpush.bf16.msra.mxu0 %v443
        %459 = vmatpush.bf16.msra.mxu0 %v442
        %460 = vmatmul.bf16.gmra.mxu0 %v447
        %v461 = vpop.f32.mrf.mxu0
        %v462 = vadd.f32 0.0, %v461
        %v463 = vpop.f32.mrf.mxu0
        %v464 = vadd.f32 0.0, %v463
        %465 = vmatmul.bf16.gmra.mxu0 %v450
        %v466 = vpop.f32.mrf.mxu0
        %v467 = vadd.f32 0.0, %v466
        %v468 = vpop.f32.mrf.mxu0
        %469 = vdwg.mxu0
        %v470 = vadd.f32 %v415, %v462
        %v471 = vadd.f32 %v417, %v464
        %v472 = vadd.f32 %v420, %v467
        %v473 = vld [vmem:[#allocation8] sm:$0x1]
        %v475 = vperm.slane %v473, 0
        %v477 = vadd.f32 %v470, %v475
        %v478 = vadd.f32 %v471, %v475
        %v479 = vadd.f32 %v472, %v475
        %v480 = vlaneseq
        %v481 = vshrl.u32 %v480, 7
        %v482 = vadd.s32 %v481, 8
        %v483 = vadd.s32 %v481, 16
        %vm484 = vcmp.ge.s32.totalorder %v481, 1
        %vm485 = vcmp.ge.s32.totalorder %v482, 1
        %vm486 = vcmp.ge.s32.totalorder %v483, 1
        %vm487 = vcmp.le.s32.totalorder %v481, 16
        %vm488 = vcmp.le.s32.totalorder %v482, 16
        %vm489 = vcmp.le.s32.totalorder %v483, 16
        %vm490 = vmand %vm484, %vm487
        %vm491 = vmand %vm485, %vm488
        %vm492 = vmand %vm486, %vm489
        %v493 = vsub.f32 0.0, %v477
        %v494 = vsub.f32 0.0, %v478
        %v495 = vsub.f32 0.0, %v479
        %v496 = vmul.f32 %v493, 1.442695
        %v497 = vpow.pop %v496
        %v498 = vmul.f32 %v494, 1.442695
        %v499 = vpow.pop %v498
        %v500 = vmul.f32 %v495, 1.442695
        %v501 = vpow.pop %v500
        %v502 = vadd.f32 %v497, 1.0
        %v503 = vadd.f32 %v499, 1.0
        %v504 = vadd.f32 %v501, 1.0
        %v505 = vrcp.pop %v502
        %v506 = vrcp.pop %v503
        %v507 = vrcp.pop %v504
        %v508 = vmul.f32 %v477, %v505
        %v509 = vmul.f32 %v478, %v506
        %v510 = vmul.f32 %v479, %v507
        %v511 = vsel %vm490, %v508, 0.0
        %v512 = vsel %vm491, %v509, 0.0
        %v513 = vsel %vm492, %v510, 0.0
        %s514 = scalar_lea.vmem [#allocation6], 48
        %v515 = vld [vmem:[%s514] sm:$0xf]
        %v516 = vld [vmem:[%s514 + $0x4] sm:$0xf]
        %v517 = vld [vmem:[%s514 + $0x8] sm:$0xf]
        %v518 = vld [vmem:[%s514 + $0xc] sm:$0xf]
        %v519 = vpack.c.bf16 %v512, %v511
        %s520 = scalar_lea.vmem [#allocation6], 64
        %v521 = vld [vmem:[%s520] sm:$0xf]
        %v522 = vld [vmem:[%s520 + $0x4] sm:$0xf]
        %v523 = vld [vmem:[%s520 + $0x8] sm:$0xf]
        %v524 = vld [vmem:[%s520 + $0xc] sm:$0xf]
        %v525 = vpack.c.bf16 %v513, %v513
        %v527 = vshrl.u32 %v519, 16
        %v529 = vshll.u32 %v519, 16
        %v531 = vrot.slane %v529, 1
        %v532 = vor.u32 %v527, %v531
        %v534 = vshll.u32 %v525, 16
        %v536 = vrot.slane %v534, 1
        %v537 = vsel %vm337, %v532, %v536
        %v542 = vunpack.c.l.b16 %v521
        %v543 = vunpack.c.l.b16 %v522
        %v544 = vunpack.c.l.b16 %v523
        %v545 = vunpack.c.l.b16 %v524
        %v546 = vpack.c.b16 %v543, %v542
        %v547 = vpack.c.b16 %v545, %v544
        %v551 = vsel %vm296, %v537, 0
        %553 = vmatpush.bf16.msra.mxu0 0
        %554 = vmatpush.bf16.msra.mxu0 0
        %555 = vmatpush.bf16.msra.mxu0 0
        %556 = vmatpush.bf16.msra.mxu0 0
        %557 = vmatpush.bf16.msra.mxu0 0
        %558 = vmatpush.bf16.msra.mxu0 0
        %559 = vmatpush.bf16.msra.mxu0 %v547
        %560 = vmatpush.bf16.msra.mxu0 %v546
        %561 = vmatmul.bf16.gmra.mxu0 %v551
        %v562 = vpop.f32.mrf.mxu0
        %v563 = vadd.f32 0.0, %v562
        %v564 = vpop.f32.mrf.mxu0
        %v565 = vadd.f32 0.0, %v564
        %566 = vdwg.mxu0
        %v571 = vunpack.c.l.b16 %v515
        %v572 = vunpack.c.l.b16 %v516
        %v573 = vunpack.c.l.b16 %v517
        %v574 = vunpack.c.l.b16 %v518
        %v575 = vpack.c.b16 %v572, %v571
        %v576 = vpack.c.b16 %v574, %v573
        %v579 = vsel %vm296, %v519, 0
        %581 = vmatpush.bf16.msra.mxu0 0
        %582 = vmatpush.bf16.msra.mxu0 0
        %583 = vmatpush.bf16.msra.mxu0 0
        %584 = vmatpush.bf16.msra.mxu0 0
        %585 = vmatpush.bf16.msra.mxu0 0
        %586 = vmatpush.bf16.msra.mxu0 0
        %587 = vmatpush.bf16.msra.mxu0 %v576
        %588 = vmatpush.bf16.msra.mxu0 %v575
        %589 = vmatmul.bf16.gmra.mxu0 %v579
        %v590 = vpop.f32.mrf.mxu0
        %v591 = vadd.f32 %v563, %v590
        %v592 = vpop.f32.mrf.mxu0
        %v593 = vadd.f32 %v565, %v592
        %594 = vdwg.mxu0
        %s595 = scalar_lea.vmem [#allocation6], 80
        %v596 = vld [vmem:[%s595] sm:$0xf]
        %v597 = vld [vmem:[%s595 + $0x4] sm:$0xf]
        %v598 = vld [vmem:[%s595 + $0x8] sm:$0xf]
        %v599 = vld [vmem:[%s595 + $0xc] sm:$0xf]
        %v602 = vrot.slane %v519, 1
        %v603 = vrot.slane %v525, 1
        %v604 = vsel %vm430, %v602, %v603
        %v609 = vunpack.c.l.b16 %v596
        %v610 = vunpack.c.l.b16 %v597
        %v611 = vunpack.c.l.b16 %v598
        %v612 = vunpack.c.l.b16 %v599
        %v613 = vpack.c.b16 %v610, %v609
        %v614 = vpack.c.b16 %v612, %v611
        %v618 = vsel %vm296, %v604, 0
        %620 = vmatpush.bf16.msra.mxu0 0
        %621 = vmatpush.bf16.msra.mxu0 0
        %622 = vmatpush.bf16.msra.mxu0 0
        %623 = vmatpush.bf16.msra.mxu0 0
        %624 = vmatpush.bf16.msra.mxu0 0
        %625 = vmatpush.bf16.msra.mxu0 0
        %626 = vmatpush.bf16.msra.mxu0 %v614
        %627 = vmatpush.bf16.msra.mxu0 %v613
        %628 = vmatmul.bf16.gmra.mxu0 %v618
        %v629 = vpop.f32.mrf.mxu0
        %v630 = vadd.f32 0.0, %v629
        %v631 = vpop.f32.mrf.mxu0
        %v632 = vadd.f32 0.0, %v631
        %633 = vdwg.mxu0
        %v634 = vadd.f32 %v591, %v630
        %v635 = vadd.f32 %v593, %v632
        %s636 = scalar_lea.vmem [#allocation8], 1
        %v637 = vld [vmem:[%s636] sm:$0x1]
        %v639 = vperm.slane %v637, 0
        %v641 = vadd.f32 %v634, %v639
        %v642 = vadd.f32 %v635, %v639
        %vm646 = vcmask 1045504
        %v647 = vrot.slane %v305, 2
        %v648 = vrot.slane %v306, 2
        %v649 = vsel %vm646, %v647, %v648
        %v650 = vrot.slane %v307, 2
        %v651 = vsel %vm646, %v648, %v650
        %v654 = vadd.f32 %v641, %v649
        %v655 = vadd.f32 %v642, %v651
        %v656 = vmax.f32 %v654, 0.0
        %v657 = vmax.f32 %v655, 0.0
        %658 = vst.msk [vmem:[#allocation2 + $0x2] sm:$0xff] %vm296, %v656
        %659 = vst.msk [vmem:[#allocation2 + $0xa] sm:$0xff] %vm296, %v657
        %v660 = vld [vmem:[#allocation2] sm:$0xff]
        %v661 = vld [vmem:[#allocation2 + $0x8] sm:$0xff]
        %v662 = vld [vmem:[#allocation2 + $0x10] sm:$0xf]
        %v663 = vsub.f32 0.0, %v660
        %v664 = vsub.f32 0.0, %v661
        %v665 = vsub.f32 0.0, %v662
        %v666 = vmul.f32 %v663, 1.442695
        %v667 = vpow.pop %v666
        %v668 = vmul.f32 %v664, 1.442695
        %v669 = vpow.pop %v668
        %v670 = vmul.f32 %v665, 1.442695
        %v671 = vpow.pop %v670
        %v672 = vadd.f32 %v667, 1.0
        %v673 = vadd.f32 %v669, 1.0
        %v674 = vadd.f32 %v671, 1.0
        %v675 = vrcp.pop %v672
        %v676 = vrcp.pop %v673
        %v677 = vrcp.pop %v674
        %v678 = vmul.f32 %v660, %v675
        %v679 = vmul.f32 %v661, %v676
        %v680 = vmul.f32 %v662, %v677
        %s681 = scalar_lea.vmem [#allocation6], 96
        %v682 = vld [vmem:[%s681] sm:$0xf]
        %v683 = vld [vmem:[%s681 + $0x4] sm:$0xf]
        %v684 = vld [vmem:[%s681 + $0x8] sm:$0xf]
        %v685 = vld [vmem:[%s681 + $0xc] sm:$0xf]
        %v686 = vpack.c.bf16 %v679, %v678
        %v687 = vpack.c.bf16 %v680, %v680
        %s688 = scalar_lea.vmem [#allocation6], 112
        %v689 = vld [vmem:[%s688] sm:$0xf]
        %v690 = vld [vmem:[%s688 + $0x4] sm:$0xf]
        %v691 = vld [vmem:[%s688 + $0x8] sm:$0xf]
        %v692 = vld [vmem:[%s688 + $0xc] sm:$0xf]
        %v694 = vshrl.u32 %v686, 16
        %v696 = vshll.u32 %v686, 16
        %v698 = vrot.slane %v696, 1
        %v699 = vor.u32 %v694, %v698
        %v701 = vshll.u32 %v687, 16
        %v703 = vrot.slane %v701, 1
        %v704 = vsel %vm337, %v699, %v703
        %v705 = vshrl.u32 %v687, 16
        %v707 = vor.u32 %v705, %v703
        %v712 = vunpack.c.l.b16 %v689
        %v713 = vunpack.c.l.b16 %v690
        %v714 = vunpack.c.l.b16 %v691
        %v715 = vunpack.c.l.b16 %v692
        %v716 = vpack.c.b16 %v713, %v712
        %v717 = vpack.c.b16 %v715, %v714
        %v721 = vsel %vm296, %v704, 0
        %v724 = vsel %vm296, %v707, 0
        %726 = vmatpush.bf16.msra.mxu0 0
        %727 = vmatpush.bf16.msra.mxu0 0
        %728 = vmatpush.bf16.msra.mxu0 0
        %729 = vmatpush.bf16.msra.mxu0 0
        %730 = vmatpush.bf16.msra.mxu0 0
        %731 = vmatpush.bf16.msra.mxu0 0
        %732 = vmatpush.bf16.msra.mxu0 %v717
        %733 = vmatpush.bf16.msra.mxu0 %v716
        %734 = vmatmul.bf16.gmra.mxu0 %v721
        %v735 = vpop.f32.mrf.mxu0
        %v736 = vadd.f32 0.0, %v735
        %v737 = vpop.f32.mrf.mxu0
        %v738 = vadd.f32 0.0, %v737
        %739 = vmatmul.bf16.gmra.mxu0 %v724
        %v740 = vpop.f32.mrf.mxu0
        %v741 = vadd.f32 0.0, %v740
        %v742 = vpop.f32.mrf.mxu0
        %743 = vdwg.mxu0
        %v748 = vunpack.c.l.b16 %v682
        %v749 = vunpack.c.l.b16 %v683
        %v750 = vunpack.c.l.b16 %v684
        %v751 = vunpack.c.l.b16 %v685
        %v752 = vpack.c.b16 %v749, %v748
        %v753 = vpack.c.b16 %v751, %v750
        %v756 = vsel %vm296, %v686, 0
        %v758 = vsel %vm296, %v687, 0
        %760 = vmatpush.bf16.msra.mxu0 0
        %761 = vmatpush.bf16.msra.mxu0 0
        %762 = vmatpush.bf16.msra.mxu0 0
        %763 = vmatpush.bf16.msra.mxu0 0
        %764 = vmatpush.bf16.msra.mxu0 0
        %765 = vmatpush.bf16.msra.mxu0 0
        %766 = vmatpush.bf16.msra.mxu0 %v753
        %767 = vmatpush.bf16.msra.mxu0 %v752
        %768 = vmatmul.bf16.gmra.mxu0 %v756
        %v769 = vpop.f32.mrf.mxu0
        %v770 = vadd.f32 %v736, %v769
        %v771 = vpop.f32.mrf.mxu0
        %v772 = vadd.f32 %v738, %v771
        %773 = vmatmul.bf16.gmra.mxu0 %v758
        %v774 = vpop.f32.mrf.mxu0
        %v775 = vadd.f32 %v741, %v774
        %v776 = vpop.f32.mrf.mxu0
        %777 = vdwg.mxu0
        %s778 = scalar_lea.vmem [#allocation6], 128
        %v779 = vld [vmem:[%s778] sm:$0xf]
        %v780 = vld [vmem:[%s778 + $0x4] sm:$0xf]
        %v781 = vld [vmem:[%s778 + $0x8] sm:$0xf]
        %v782 = vld [vmem:[%s778 + $0xc] sm:$0xf]
        %v785 = vrot.slane %v686, 1
        %v786 = vrot.slane %v687, 1
        %v787 = vsel %vm430, %v785, %v786
        %v792 = vunpack.c.l.b16 %v779
        %v793 = vunpack.c.l.b16 %v780
        %v794 = vunpack.c.l.b16 %v781
        %v795 = vunpack.c.l.b16 %v782
        %v796 = vpack.c.b16 %v793, %v792
        %v797 = vpack.c.b16 %v795, %v794
        %v801 = vsel %vm296, %v787, 0
        %v804 = vsel %vm296, %v786, 0
        %806 = vmatpush.bf16.msra.mxu0 0
        %807 = vmatpush.bf16.msra.mxu0 0
        %808 = vmatpush.bf16.msra.mxu0 0
        %809 = vmatpush.bf16.msra.mxu0 0
        %810 = vmatpush.bf16.msra.mxu0 0
        %811 = vmatpush.bf16.msra.mxu0 0
        %812 = vmatpush.bf16.msra.mxu0 %v797
        %813 = vmatpush.bf16.msra.mxu0 %v796
        %814 = vmatmul.bf16.gmra.mxu0 %v801
        %v815 = vpop.f32.mrf.mxu0
        %v816 = vadd.f32 0.0, %v815
        %v817 = vpop.f32.mrf.mxu0
        %v818 = vadd.f32 0.0, %v817
        %819 = vmatmul.bf16.gmra.mxu0 %v804
        %v820 = vpop.f32.mrf.mxu0
        %v821 = vadd.f32 0.0, %v820
        %v822 = vpop.f32.mrf.mxu0
        %823 = vdwg.mxu0
        %v824 = vadd.f32 %v770, %v816
        %v825 = vadd.f32 %v772, %v818
        %v826 = vadd.f32 %v775, %v821
        %s827 = scalar_lea.vmem [#allocation8], 2
        %v828 = vld [vmem:[%s827] sm:$0x1]
        %v830 = vperm.slane %v828, 0
        %v832 = vadd.f32 %v824, %v830
        %v833 = vadd.f32 %v825, %v830
        %v834 = vadd.f32 %v826, %v830
        %v835 = vsub.f32 0.0, %v832
        %v836 = vsub.f32 0.0, %v833
        %v837 = vsub.f32 0.0, %v834
        %v838 = vmul.f32 %v835, 1.442695
        %v839 = vpow.pop %v838
        %v840 = vmul.f32 %v836, 1.442695
        %v841 = vpow.pop %v840
        %v842 = vmul.f32 %v837, 1.442695
        %v843 = vpow.pop %v842
        %v844 = vadd.f32 %v839, 1.0
        %v845 = vadd.f32 %v841, 1.0
        %v846 = vadd.f32 %v843, 1.0
        %v847 = vrcp.pop %v844
        %v848 = vrcp.pop %v845
        %v849 = vrcp.pop %v846
        %v850 = vmul.f32 %v832, %v847
        %v851 = vmul.f32 %v833, %v848
        %v852 = vmul.f32 %v834, %v849
        %v853 = vsel %vm490, %v850, 0.0
        %v854 = vsel %vm491, %v851, 0.0
        %v855 = vsel %vm492, %v852, 0.0
        %s856 = scalar_lea.vmem [#allocation6], 144
        %v857 = vld [vmem:[%s856] sm:$0xf]
        %v858 = vld [vmem:[%s856 + $0x4] sm:$0xf]
        %v859 = vld [vmem:[%s856 + $0x8] sm:$0xf]
        %v860 = vld [vmem:[%s856 + $0xc] sm:$0xf]
        %v861 = vpack.c.bf16 %v854, %v853
        %s862 = scalar_lea.vmem [#allocation6], 160
        %v863 = vld [vmem:[%s862] sm:$0xf]
        %v864 = vld [vmem:[%s862 + $0x4] sm:$0xf]
        %v865 = vld [vmem:[%s862 + $0x8] sm:$0xf]
        %v866 = vld [vmem:[%s862 + $0xc] sm:$0xf]
        %v867 = vpack.c.bf16 %v855, %v855
        %v869 = vshrl.u32 %v861, 16
        %v871 = vshll.u32 %v861, 16
        %v873 = vrot.slane %v871, 1
        %v874 = vor.u32 %v869, %v873
        %v876 = vshll.u32 %v867, 16
        %v878 = vrot.slane %v876, 1
        %v879 = vsel %vm337, %v874, %v878
        %v884 = vunpack.c.l.b16 %v863
        %v885 = vunpack.c.l.b16 %v864
        %v886 = vunpack.c.l.b16 %v865
        %v887 = vunpack.c.l.b16 %v866
        %v888 = vpack.c.b16 %v885, %v884
        %v889 = vpack.c.b16 %v887, %v886
        %v893 = vsel %vm296, %v879, 0
        %895 = vmatpush.bf16.msra.mxu0 0
        %896 = vmatpush.bf16.msra.mxu0 0
        %897 = vmatpush.bf16.msra.mxu0 0
        %898 = vmatpush.bf16.msra.mxu0 0
        %899 = vmatpush.bf16.msra.mxu0 0
        %900 = vmatpush.bf16.msra.mxu0 0
        %901 = vmatpush.bf16.msra.mxu0 %v889
        %902 = vmatpush.bf16.msra.mxu0 %v888
        %903 = vmatmul.bf16.gmra.mxu0 %v893
        %v904 = vpop.f32.mrf.mxu0
        %v905 = vadd.f32 0.0, %v904
        %v906 = vpop.f32.mrf.mxu0
        %v907 = vadd.f32 0.0, %v906
        %908 = vdwg.mxu0
        %v913 = vunpack.c.l.b16 %v857
        %v914 = vunpack.c.l.b16 %v858
        %v915 = vunpack.c.l.b16 %v859
        %v916 = vunpack.c.l.b16 %v860
        %v917 = vpack.c.b16 %v914, %v913
        %v918 = vpack.c.b16 %v916, %v915
        %v921 = vsel %vm296, %v861, 0
        %923 = vmatpush.bf16.msra.mxu0 0
        %924 = vmatpush.bf16.msra.mxu0 0
        %925 = vmatpush.bf16.msra.mxu0 0
        %926 = vmatpush.bf16.msra.mxu0 0
        %927 = vmatpush.bf16.msra.mxu0 0
        %928 = vmatpush.bf16.msra.mxu0 0
        %929 = vmatpush.bf16.msra.mxu0 %v918
        %930 = vmatpush.bf16.msra.mxu0 %v917
        %931 = vmatmul.bf16.gmra.mxu0 %v921
        %v932 = vpop.f32.mrf.mxu0
        %v933 = vadd.f32 %v905, %v932
        %v934 = vpop.f32.mrf.mxu0
        %v935 = vadd.f32 %v907, %v934
        %936 = vdwg.mxu0
        %s937 = scalar_lea.vmem [#allocation6], 176
        %v938 = vld [vmem:[%s937] sm:$0xf]
        %v939 = vld [vmem:[%s937 + $0x4] sm:$0xf]
        %v940 = vld [vmem:[%s937 + $0x8] sm:$0xf]
        %v941 = vld [vmem:[%s937 + $0xc] sm:$0xf]
        %v944 = vrot.slane %v861, 1
        %v945 = vrot.slane %v867, 1
        %v946 = vsel %vm430, %v944, %v945
        %v951 = vunpack.c.l.b16 %v938
        %v952 = vunpack.c.l.b16 %v939
        %v953 = vunpack.c.l.b16 %v940
        %v954 = vunpack.c.l.b16 %v941
        %v955 = vpack.c.b16 %v952, %v951
        %v956 = vpack.c.b16 %v954, %v953
        %v960 = vsel %vm296, %v946, 0
        %962 = vmatpush.bf16.msra.mxu0 0
        %963 = vmatpush.bf16.msra.mxu0 0
        %964 = vmatpush.bf16.msra.mxu0 0
        %965 = vmatpush.bf16.msra.mxu0 0
        %966 = vmatpush.bf16.msra.mxu0 0
        %967 = vmatpush.bf16.msra.mxu0 0
        %968 = vmatpush.bf16.msra.mxu0 %v956
        %969 = vmatpush.bf16.msra.mxu0 %v955
        %970 = vmatmul.bf16.gmra.mxu0 %v960
        %v971 = vpop.f32.mrf.mxu0
        %v972 = vadd.f32 0.0, %v971
        %v973 = vpop.f32.mrf.mxu0
        %v974 = vadd.f32 0.0, %v973
        %975 = vdwg.mxu0
        %v976 = vadd.f32 %v933, %v972
        %v977 = vadd.f32 %v935, %v974
        %s978 = scalar_lea.vmem [#allocation8], 3
        %v979 = vld [vmem:[%s978] sm:$0x1]
        %v981 = vperm.slane %v979, 0
        %v983 = vadd.f32 %v976, %v981
        %v984 = vadd.f32 %v977, %v981
        %v988 = vrot.slane %v660, 2
        %v989 = vrot.slane %v661, 2
        %v990 = vsel %vm646, %v988, %v989
        %v991 = vrot.slane %v662, 2
        %v992 = vsel %vm646, %v989, %v991
        %v995 = vadd.f32 %v983, %v990
        %v996 = vadd.f32 %v984, %v992
        %v997 = vmax.f32 %v995, 0.0
        %v998 = vmax.f32 %v996, 0.0
        %999 = vst.msk [vmem:[#allocation2 + $0x2] sm:$0xff] %vm296, %v997
        %1000 = vst.msk [vmem:[#allocation2 + $0xa] sm:$0xff] %vm296, %v998
        %v1001 = vld [vmem:[#allocation2 + $0x1] sm:$0xff]
        %v1002 = vld [vmem:[#allocation2 + $0x9] sm:$0xff]
        %v1003 = vld [vmem:[#allocation2 + $0x11] sm:$0x3]
        %v1004 = vld [vmem:[#allocation9] sm:$0xf]
        %v1005 = vld [vmem:[#allocation9 + $0x4] sm:$0xf]
        %v1006 = vld [vmem:[#allocation9 + $0x8] sm:$0xf]
        %v1007 = vld [vmem:[#allocation9 + $0xc] sm:$0xf]
        %v1008 = vpack.c.bf16 %v1002, %v1001
        %s1009 = scalar_lea.vmem [#allocation9], 16
        %v1010 = vld [vmem:[%s1009] sm:$0xf]
        %v1011 = vld [vmem:[%s1009 + $0x4] sm:$0xf]
        %v1012 = vld [vmem:[%s1009 + $0x8] sm:$0xf]
        %v1013 = vld [vmem:[%s1009 + $0xc] sm:$0xf]
        %v1014 = vpack.c.bf16 %v1003, %v1003
        %v1016 = vshrl.u32 %v1008, 16
        %v1018 = vshll.u32 %v1008, 16
        %v1020 = vrot.slane %v1018, 1
        %v1021 = vor.u32 %v1016, %v1020
        %v1023 = vshll.u32 %v1014, 16
        %v1025 = vrot.slane %v1023, 1
        %v1026 = vsel %vm337, %v1021, %v1025
        %v1031 = vunpack.c.l.b16 %v1010
        %v1032 = vunpack.c.l.b16 %v1011
        %v1033 = vunpack.c.l.b16 %v1012
        %v1034 = vunpack.c.l.b16 %v1013
        %v1035 = vpack.c.b16 %v1032, %v1031
        %v1036 = vpack.c.b16 %v1034, %v1033
        %v1040 = vsel %vm296, %v1026, 0
        %1042 = vmatpush.bf16.msra.mxu0 0
        %1043 = vmatpush.bf16.msra.mxu0 0
        %1044 = vmatpush.bf16.msra.mxu0 0
        %1045 = vmatpush.bf16.msra.mxu0 0
        %1046 = vmatpush.bf16.msra.mxu0 0
        %1047 = vmatpush.bf16.msra.mxu0 0
        %1048 = vmatpush.bf16.msra.mxu0 %v1036
        %1049 = vmatpush.bf16.msra.mxu0 %v1035
        %1050 = vmatmul.bf16.gmra.mxu0 %v1040
        %v1051 = vpop.f32.mrf.mxu0
        %v1052 = vadd.f32 0.0, %v1051
        %v1053 = vpop.f32.mrf.mxu0
        %v1054 = vadd.f32 0.0, %v1053
        %1055 = vdwg.mxu0
        %v1060 = vunpack.c.l.b16 %v1004
        %v1061 = vunpack.c.l.b16 %v1005
        %v1062 = vunpack.c.l.b16 %v1006
        %v1063 = vunpack.c.l.b16 %v1007
        %v1064 = vpack.c.b16 %v1061, %v1060
        %v1065 = vpack.c.b16 %v1063, %v1062
        %v1068 = vsel %vm296, %v1008, 0
        %1070 = vmatpush.bf16.msra.mxu0 0
        %1071 = vmatpush.bf16.msra.mxu0 0
        %1072 = vmatpush.bf16.msra.mxu0 0
        %1073 = vmatpush.bf16.msra.mxu0 0
        %1074 = vmatpush.bf16.msra.mxu0 0
        %1075 = vmatpush.bf16.msra.mxu0 0
        %1076 = vmatpush.bf16.msra.mxu0 %v1065
        %1077 = vmatpush.bf16.msra.mxu0 %v1064
        %1078 = vmatmul.bf16.gmra.mxu0 %v1068
        %v1079 = vpop.f32.mrf.mxu0
        %v1080 = vadd.f32 %v1052, %v1079
        %v1081 = vpop.f32.mrf.mxu0
        %v1082 = vadd.f32 %v1054, %v1081
        %1083 = vdwg.mxu0
        %s1084 = scalar_lea.vmem [#allocation9], 32
        %v1085 = vld [vmem:[%s1084] sm:$0xf]
        %v1086 = vld [vmem:[%s1084 + $0x4] sm:$0xf]
        %v1087 = vld [vmem:[%s1084 + $0x8] sm:$0xf]
        %v1088 = vld [vmem:[%s1084 + $0xc] sm:$0xf]
        %v1091 = vrot.slane %v1008, 1
        %v1092 = vrot.slane %v1014, 1
        %v1093 = vsel %vm430, %v1091, %v1092
        %v1098 = vunpack.c.l.b16 %v1085
        %v1099 = vunpack.c.l.b16 %v1086
        %v1100 = vunpack.c.l.b16 %v1087
        %v1101 = vunpack.c.l.b16 %v1088
        %v1102 = vpack.c.b16 %v1099, %v1098
        %v1103 = vpack.c.b16 %v1101, %v1100
        %v1107 = vsel %vm296, %v1093, 0
        %1109 = vmatpush.bf16.msra.mxu0 0
        %1110 = vmatpush.bf16.msra.mxu0 0
        %1111 = vmatpush.bf16.msra.mxu0 0
        %1112 = vmatpush.bf16.msra.mxu0 0
        %1113 = vmatpush.bf16.msra.mxu0 0
        %1114 = vmatpush.bf16.msra.mxu0 0
        %1115 = vmatpush.bf16.msra.mxu0 %v1103
        %1116 = vmatpush.bf16.msra.mxu0 %v1102
        %1117 = vmatmul.bf16.gmra.mxu0 %v1107
        %v1118 = vpop.f32.mrf.mxu0
        %v1119 = vadd.f32 0.0, %v1118
        %v1120 = vpop.f32.mrf.mxu0
        %v1121 = vadd.f32 0.0, %v1120
        %1122 = vdwg.mxu0
        %v1123 = vadd.f32 %v1080, %v1119
        %v1124 = vadd.f32 %v1082, %v1121
        %v1125 = vld [vmem:[%s4] sm:$0x1]
        %v1127 = vperm.slane %v1125, 0
        %v1129 = vadd.f32 %v1123, %v1127
        %v1130 = vadd.f32 %v1124, %v1127
        %1131 = vst.msk [vmem:[%s294] sm:$0xff] %vm296, %v1129
        %1132 = vst.msk [vmem:[%s294 + $0x8] sm:$0xff] %vm296, %v1130
        %s1133 = sand.u32 %s142, 1
        %s1134 = scalar_lea.sflag [#allocation5], %s1133
        %s1135 = sand.u32 %s142, 1
        %s1136 = smul.addr %s1135, 16
        %s1137 = scalar_lea.vmem [#allocation11], %s1136
        // Predicated region
        $region57: #{tpu_custom_call.1} parent=39 // pred_check
          %p1138 = pneg %p152
        $region58: #{tpu_custom_call.1} parent=39 // pred_check_branch
          %1140 = sbr.rel (%p1138) target = $region60
        $region59: #{tpu_custom_call.1} parent=39 // pred_region
          %1142 = vsyncadd %s1134, 0
          %s1143 = smul.addr %s24, 2
          %s1144 = smul.addr %s1143, 8
          %s1145 = scalar_lea.hbm %s5, %s1144
          %s1146 = sshll.u32 %s1137, 4
          %s1147 = int_to_ptr.vmem [resolvable:$true] %s1146
          %s1148 = sshll.u32 %s1145, 4
          %s1149 = int_to_ptr.hbm [resolvable:$true] %s1148
          %1154 = dma.vmem_to_hbm [thread:$0]  %s1147, 256, %s1149, %s1134, 128, 128, 8
        $region60: #{tpu_custom_call.1} parent=39 // pred_fallthru
          _
      $region40: #{tpu_custom_call.1} parent=5 // pred_fallthru
        _
      %p1155 = scmp.le.s32.totalorder 2, %s19
      // Predicated region
      $region61: #{tpu_custom_call.1} parent=5 // pred_check
        %p1156 = pneg %p1155
      $region62: #{tpu_custom_call.1} parent=5 // pred_check_branch
        %1158 = sbr.rel (%p1156) target = $region64
      $region63: #{tpu_custom_call.1} parent=5 // pred_region
        %s1159 = ssub.s32 %s19, 2
        // Predicated region
        $region65: #{tpu_custom_call.1} parent=63 // pred_check
          %p1160 = pneg %p158
        $region66: #{tpu_custom_call.1} parent=63 // pred_check_branch
          %1162 = sbr.rel (%p1160) target = $region68
        $region67: #{tpu_custom_call.1} parent=63 // pred_region
          %s1163 = sand.u32 %s143, 1
          %s1164 = scalar_lea.sflag [#allocation5], %s1163
          %s1165 = sand.u32 %s143, 1
          %s1166 = smul.addr %s1165, 16
          %s1167 = scalar_lea.vmem [#allocation11], %s1166
          %1169 = dma.done %s1164, 256
        $region68: #{tpu_custom_call.1} parent=63 // pred_fallthru
          _
      $region64: #{tpu_custom_call.1} parent=5 // pred_fallthru
        _
    $region6: #{tpu_custom_call.1} parent=1 // loop_footer
      %s23 = sadd.s32 1, %s19
    $region7: #{tpu_custom_call.1} parent=1 // loop_footer_branch
      %18 = sbr.rel target = $region3
    $region8: #{tpu_custom_call.1} parent=1 // loop_exit
      _
    %1170 = vsyncpa [#allocation4], 1
    %s1171 = scalar_lea.sflag [#allocation4], 1
    %1172 = vsyncpa %s1171, 1
    %1173 = vsyncpa [#allocation7], 1
    %1174 = vsyncpa [#allocation10], 1
    %1175 = vsyncpa [#allocation5], 1
    %s1176 = scalar_lea.sflag [#allocation5], 1
    %1177 = vsyncpa %s1176, 1

</llo_original>
